<compile_context>
chip_gen: v6e
topology: v6e:2x2x1
jax: 0.10.0
libtpu: 0.0.40
codegen_flags: <defaults>
</compile_context>

<pallas_src>
import jax
import jax.numpy as jnp
from jax.experimental import pallas as pl
from jax.experimental.pallas import tpu as pltpu

LEAK = 0.01          # PyTorch LeakyReLU default negative_slope
HIDDEN = 32
ENCODE = 32


def _leaky_relu(x):
    return jnp.where(x >= 0, x, LEAK * x)


def _make_kernel(bf16_matmuls=False):
    mm_dt = jnp.bfloat16 if bf16_matmuls else jnp.float32

    def kernel(obs_ref, act_ref, h0_ref, c0_ref,
               w1_ref, b1_ref, wih_ref, whh_ref, bg_ref,
               w2_ref, b2_ref, w3e_ref, w3a_ref, b3_ref,
               next_obs_ref, hT_ref, cT_ref, hbuf_ref):
        Bc, T, obs_size = obs_ref.shape
        act_size = act_ref.shape[-1]
        H = HIDDEN

        def mm(a, w):
            # bulk matmuls may run in bf16 on the MXU; always accumulate f32
            return jnp.dot(a.astype(mm_dt), w.astype(mm_dt),
                           preferred_element_type=jnp.float32)

        # ---- bulk (non-recurrent) work hoisted out of the recurrence ------
        obs_flat = obs_ref[...].reshape(Bc * T, obs_size)   # free reshape
        act_flat = act_ref[...].reshape(Bc * T, act_size)

        e1_all = _leaky_relu(mm(obs_flat, w1_ref[...]) + b1_ref[...])
        # LSTM input projection for all timesteps; bg = bih + bhh (folded)
        gx_all = mm(e1_all, wih_ref[...]) + bg_ref[...]      # (Bc*T, 4H)
        gx_bt = gx_all.reshape(Bc, T, 4 * H)

        whh = whh_ref[...]

        # ---- serial recurrence: only h @ Whh + gate math remains ----------
        h = h0_ref[...]
        c = c0_ref[...]
        for t in range(T):                       # full static unroll
            gates = gx_bt[:, t, :] + jnp.dot(
                h, whh, preferred_element_type=jnp.float32)   # (Bc, 4H)
            sg = jax.nn.sigmoid(gates)           # full 128-lane vreg (EUP)
            th = jnp.tanh(gates)                 # full 128-lane vreg (EUP)
            # PyTorch gate order: i, f, g, o
            c = sg[:, H:2 * H] * c + sg[:, 0:H] * th[:, 2 * H:3 * H]
            h = sg[:, 3 * H:4 * H] * jnp.tanh(c)
            hbuf_ref[:, t, :] = h                # stash for the bulk tail
        hT_ref[...] = h
        cT_ref[...] = c

        # ---- bulk tail: encode_2 + next_obs head, one pass over all steps -
        h_all = hbuf_ref[...].reshape(Bc * T, H)
        enc_all = _leaky_relu(mm(_leaky_relu(h_all), w2_ref[...]) + b2_ref[...])
        y_all = (mm(enc_all, w3e_ref[...]) +
                 mm(act_flat, w3a_ref[...]) + b3_ref[...])
        # single bulk store (replaces T tiny per-step masked stores)
        next_obs_ref[...] = y_all.reshape(Bc, T, obs_size)

    return kernel


def _prep_hidden(hidden, B):
    if hidden is None:
        z = jnp.zeros((B, HIDDEN), jnp.float32)
        return z, z
    h0, c0 = hidden
    h0 = jnp.asarray(h0, jnp.float32)
    c0 = jnp.asarray(c0, jnp.float32)
    if h0.ndim == 3:          # accept PyTorch (num_layers, B, H) convention
        h0, c0 = h0[0], c0[0]
    return h0, c0


def transitioner_forward(obs, action, params, hidden=None, bf16_matmuls=False):
    """obs: (B, T, obs_size), action: (B, T, action_size) -> (next_obs, (h, c))."""
    B, T, obs_size = obs.shape
    action_size = action.shape[-1]
    h0, c0 = _prep_hidden(hidden, B)

    obs = jnp.asarray(obs, jnp.float32)
    action = jnp.asarray(action, jnp.float32)

    # fold the two LSTM biases into one (saves a per-step broadcast + add)
    bg = params["bih"] + params["bhh"]

    # Batch-parallel grid (uses both TensorCores on v7x). Only split when each
    # chunk keeps a sublane-aligned leading dim; otherwise run a single block.
    if B % 2 == 0 and (B // 2) % 8 == 0:
        num_chunks = 2
    else:
        num_chunks = 1
    Bc = B // num_chunks

    def full_spec(arr):
        nd = arr.ndim
        return pl.BlockSpec(arr.shape, lambda i, _nd=nd: (0,) * _nd)

    in_specs = [
        pl.BlockSpec((Bc, T, obs_size), lambda i: (i, 0, 0)),
        pl.BlockSpec((Bc, T, action_size), lambda i: (i, 0, 0)),
        pl.BlockSpec((Bc, HIDDEN), lambda i: (i, 0)),
        pl.BlockSpec((Bc, HIDDEN), lambda i: (i, 0)),
        full_spec(params["w1"]), full_spec(params["b1"]),
        full_spec(params["wih"]), full_spec(params["whh"]), full_spec(bg),
        full_spec(params["w2"]), full_spec(params["b2"]),
        full_spec(params["w3e"]), full_spec(params["w3a"]),
        full_spec(params["b3"]),
    ]
    out_specs = [
        pl.BlockSpec((Bc, T, obs_size), lambda i: (i, 0, 0)),
        pl.BlockSpec((Bc, HIDDEN), lambda i: (i, 0)),
        pl.BlockSpec((Bc, HIDDEN), lambda i: (i, 0)),
    ]
    out_shapes = (
        jax.ShapeDtypeStruct((B, T, obs_size), jnp.float32),
        jax.ShapeDtypeStruct((B, HIDDEN), jnp.float32),
        jax.ShapeDtypeStruct((B, HIDDEN), jnp.float32),
    )

    next_obs, hT, cT = pl.pallas_call(
        _make_kernel(bf16_matmuls),
        out_shape=out_shapes,
        grid_spec=pltpu.PrefetchScalarGridSpec(
            num_scalar_prefetch=0,
            grid=(num_chunks,),
            in_specs=in_specs,
            out_specs=out_specs,
            scratch_shapes=[pltpu.VMEM((Bc, T, HIDDEN), jnp.float32)],
        ),
        compiler_params=pltpu.CompilerParams(
            dimension_semantics=("parallel",)),
    )(obs, action, h0, c0,
      params["w1"], params["b1"],
      params["wih"], params["whh"], bg,
      params["w2"], params["b2"],
      params["w3e"], params["w3a"], params["b3"])

    return next_obs, (hT, cT)


def init_params(key, obs_size, action_size, hidden=HIDDEN, encode=ENCODE):
    ks = jax.random.split(key, 11)

    def uni(k, shape, fan_in):
        bound = 1.0 / jnp.sqrt(jnp.float32(fan_in))
        return jax.random.uniform(k, shape, jnp.float32, -bound, bound)

    params = {
        # encode_1
        "w1":  uni(ks[0], (obs_size, hidden), obs_size),
        "b1":  uni(ks[1], (1, hidden), obs_size),
        # lstm (weights stored transposed: (in, 4H), gate order i,f,g,o)
        "wih": uni(ks[2], (hidden, 4 * hidden), hidden),
        "whh": uni(ks[3], (hidden, 4 * hidden), hidden),
        "bih": uni(ks[4], (1, 4 * hidden), hidden),
        "bhh": uni(ks[5], (1, 4 * hidden), hidden),
        # encode_2
        "w2":  uni(ks[6], (hidden, encode), hidden),
        "b2":  uni(ks[7], (1, encode), hidden),
        # next_obs head, split into encoding / action parts to avoid concat
        "w3e": uni(ks[8], (encode, obs_size), encode + action_size),
        "w3a": uni(ks[9], (action_size, obs_size), encode + action_size),
        "b3":  uni(ks[10], (1, obs_size), encode + action_size),
    }
    return params


def _reference_forward(obs, action, params, hidden=None):
    """Pure-JAX reference with identical math (for a correctness check)."""
    B, T, _ = obs.shape
    H = HIDDEN
    h = jnp.zeros((B, H), jnp.float32) if hidden is None else hidden[0]
    c = jnp.zeros((B, H), jnp.float32) if hidden is None else hidden[1]
    outs = []
    for t in range(T):
        x_t = obs[:, t, :]
        a_t = action[:, t, :]
        e1 = _leaky_relu(x_t @ params["w1"] + params["b1"])
        gates = (e1 @ params["wih"] + params["bih"] +
                 h @ params["whh"] + params["bhh"])
        i_g = jax.nn.sigmoid(gates[:, 0 * H:1 * H])
        f_g = jax.nn.sigmoid(gates[:, 1 * H:2 * H])
        g_g = jnp.tanh(gates[:, 2 * H:3 * H])
        o_g = jax.nn.sigmoid(gates[:, 3 * H:4 * H])
        c = f_g * c + i_g * g_g
        h = o_g * jnp.tanh(c)
        enc = _leaky_relu(_leaky_relu(h) @ params["w2"] + params["b2"])
        y = enc @ params["w3e"] + a_t @ params["w3a"] + params["b3"]
        outs.append(y)
    return jnp.stack(outs, axis=1), (h, c)


if __name__ == "__main__":
    B, T = 2, 8
    OBS, ACT = 16, 4

    key = jax.random.PRNGKey(0)
    k_obs, k_act, k_par = jax.random.split(key, 3)
    obs = jax.random.normal(k_obs, (B, T, OBS), jnp.float32)
    action = jax.random.normal(k_act, (B, T, ACT), jnp.float32)
    params = init_params(k_par, OBS, ACT)

    next_obs, (hT, cT) = transitioner_forward(obs, action, params, hidden=None)
    jax.block_until_ready((next_obs, hT, cT))

    ref_next, (ref_h, ref_c) = _reference_forward(obs, action, params)
    assert next_obs.shape == (B, T, OBS)
    assert hT.shape == (B, HIDDEN) and cT.shape == (B, HIDDEN)
    assert jnp.allclose(next_obs, ref_next, rtol=1e-4, atol=1e-4)
    assert jnp.allclose(hT, ref_h, rtol=1e-4, atol=1e-4)
    assert jnp.allclose(cT, ref_c, rtol=1e-4, atol=1e-4)

    print("KERNEL_OK")
</pallas_src>

<mosaic_0001>
module attributes {stable_mosaic.version = 11 : i64} {
  func.func @kernel(%arg0: i32, %arg1: memref<2x8x16xf32, #tpu.memory_space<vmem>>, %arg2: memref<2x8x4xf32, #tpu.memory_space<vmem>>, %arg3: memref<2x32xf32, #tpu.memory_space<vmem>>, %arg4: memref<2x32xf32, #tpu.memory_space<vmem>>, %arg5: memref<16x32xf32, #tpu.memory_space<vmem>>, %arg6: memref<1x32xf32, #tpu.memory_space<vmem>>, %arg7: memref<32x128xf32, #tpu.memory_space<vmem>>, %arg8: memref<32x128xf32, #tpu.memory_space<vmem>>, %arg9: memref<1x128xf32, #tpu.memory_space<vmem>>, %arg10: memref<32x32xf32, #tpu.memory_space<vmem>>, %arg11: memref<1x32xf32, #tpu.memory_space<vmem>>, %arg12: memref<32x16xf32, #tpu.memory_space<vmem>>, %arg13: memref<4x16xf32, #tpu.memory_space<vmem>>, %arg14: memref<1x16xf32, #tpu.memory_space<vmem>>, %arg15: memref<2x8x16xf32, #tpu.memory_space<vmem>>, %arg16: memref<2x32xf32, #tpu.memory_space<vmem>>, %arg17: memref<2x32xf32, #tpu.memory_space<vmem>>, %arg18: memref<2x8x32xf32, #tpu.memory_space<vmem>>) attributes {dimension_semantics = [#tpu.dimension_semantics<parallel>], iteration_bounds = array<i64: 1>, scalar_prefetch = 0 : i64, scratch_operands = 1 : i64, tpu.core_type = #tpu.core_type<tc>, window_params = [{transform_indices = @transform_0, window_bounds = array<i64: 2, 8, 16>}, {transform_indices = @transform_1, window_bounds = array<i64: 2, 8, 4>}, {transform_indices = @transform_2, window_bounds = array<i64: 2, 32>}, {transform_indices = @transform_3, window_bounds = array<i64: 2, 32>}, {pipeline_mode = #tpu.pipeline_mode<synchronous>, transform_indices = @transform_4, window_bounds = array<i64: 16, 32>}, {pipeline_mode = #tpu.pipeline_mode<synchronous>, transform_indices = @transform_5, window_bounds = array<i64: 1, 32>}, {pipeline_mode = #tpu.pipeline_mode<synchronous>, transform_indices = @transform_6, window_bounds = array<i64: 32, 128>}, {pipeline_mode = #tpu.pipeline_mode<synchronous>, transform_indices = @transform_7, window_bounds = array<i64: 32, 128>}, {pipeline_mode = #tpu.pipeline_mode<synchronous>, transform_indices = @transform_8, window_bounds = array<i64: 1, 128>}, {pipeline_mode = #tpu.pipeline_mode<synchronous>, transform_indices = @transform_9, window_bounds = array<i64: 32, 32>}, {pipeline_mode = #tpu.pipeline_mode<synchronous>, transform_indices = @transform_10, window_bounds = array<i64: 1, 32>}, {pipeline_mode = #tpu.pipeline_mode<synchronous>, transform_indices = @transform_11, window_bounds = array<i64: 32, 16>}, {pipeline_mode = #tpu.pipeline_mode<synchronous>, transform_indices = @transform_12, window_bounds = array<i64: 4, 16>}, {pipeline_mode = #tpu.pipeline_mode<synchronous>, transform_indices = @transform_13, window_bounds = array<i64: 1, 16>}, {transform_indices = @transform_14, window_bounds = array<i64: 2, 8, 16>}, {transform_indices = @transform_15, window_bounds = array<i64: 2, 32>}, {transform_indices = @transform_16, window_bounds = array<i64: 2, 32>}]} {
    %c0 = arith.constant 0 : index
    %c0_0 = arith.constant 0 : index
    %c0_1 = arith.constant 0 : index
    %0 = vector.load %arg1[%c0, %c0_0, %c0_1] : memref<2x8x16xf32, #tpu.memory_space<vmem>>, vector<2x8x16xf32>
    %1 = vector.shape_cast %0 : vector<2x8x16xf32> to vector<16x16xf32>
    %c0_2 = arith.constant 0 : index
    %c0_3 = arith.constant 0 : index
    %c0_4 = arith.constant 0 : index
    %2 = vector.load %arg2[%c0_2, %c0_3, %c0_4] : memref<2x8x4xf32, #tpu.memory_space<vmem>>, vector<2x8x4xf32>
    %3 = vector.shape_cast %2 : vector<2x8x4xf32> to vector<16x4xf32>
    %c0_5 = arith.constant 0 : index
    %c0_6 = arith.constant 0 : index
    %4 = vector.load %arg5[%c0_5, %c0_6] : memref<16x32xf32, #tpu.memory_space<vmem>>, vector<16x32xf32>
    %cst = arith.constant dense<0.000000e+00> : vector<16x32xf32>
    %5 = tpu.matmul %1, %4, %cst {dimension_numbers = #tpu.dot_dimension_numbers<[1], [0], [0], [1], [0, 0, 1, 1], [], []>} : vector<16x16xf32>, vector<16x32xf32>, vector<16x32xf32> -> vector<16x32xf32>
    %c0_7 = arith.constant 0 : index
    %c0_8 = arith.constant 0 : index
    %6 = vector.load %arg6[%c0_7, %c0_8] : memref<1x32xf32, #tpu.memory_space<vmem>>, vector<1x32xf32>
    %7 = vector.broadcast %6 : vector<1x32xf32> to vector<16x32xf32>
    %8 = arith.addf %5, %7 : vector<16x32xf32>
    %cst_9 = arith.constant 0.000000e+00 : f32
    %9 = vector.broadcast %cst_9 : f32 to vector<16x32xf32>
    %10 = arith.cmpf oge, %8, %9 : vector<16x32xf32>
    %cst_10 = arith.constant 0.00999999977 : f32
    %11 = vector.broadcast %cst_10 : f32 to vector<16x32xf32>
    %12 = arith.mulf %11, %8 : vector<16x32xf32>
    %13 = arith.select %10, %8, %12 : vector<16x32xi1>, vector<16x32xf32>
    %c0_11 = arith.constant 0 : index
    %c0_12 = arith.constant 0 : index
    %14 = vector.load %arg7[%c0_11, %c0_12] : memref<32x128xf32, #tpu.memory_space<vmem>>, vector<32x128xf32>
    %cst_13 = arith.constant dense<0.000000e+00> : vector<16x128xf32>
    %15 = tpu.matmul %13, %14, %cst_13 {dimension_numbers = #tpu.dot_dimension_numbers<[1], [0], [0], [1], [0, 0, 1, 1], [], []>} : vector<16x32xf32>, vector<32x128xf32>, vector<16x128xf32> -> vector<16x128xf32>
    %c0_14 = arith.constant 0 : index
    %c0_15 = arith.constant 0 : index
    %16 = vector.load %arg9[%c0_14, %c0_15] : memref<1x128xf32, #tpu.memory_space<vmem>>, vector<1x128xf32>
    %17 = vector.broadcast %16 : vector<1x128xf32> to vector<16x128xf32>
    %18 = arith.addf %15, %17 : vector<16x128xf32>
    %19 = vector.shape_cast %18 : vector<16x128xf32> to vector<2x8x128xf32>
    %c0_16 = arith.constant 0 : index
    %c0_17 = arith.constant 0 : index
    %20 = vector.load %arg8[%c0_16, %c0_17] : memref<32x128xf32, #tpu.memory_space<vmem>>, vector<32x128xf32>
    %c0_18 = arith.constant 0 : index
    %c0_19 = arith.constant 0 : index
    %21 = vector.load %arg3[%c0_18, %c0_19] : memref<2x32xf32, #tpu.memory_space<vmem>>, vector<2x32xf32>
    %c0_20 = arith.constant 0 : index
    %c0_21 = arith.constant 0 : index
    %22 = vector.load %arg4[%c0_20, %c0_21] : memref<2x32xf32, #tpu.memory_space<vmem>>, vector<2x32xf32>
    %23 = vector.extract_strided_slice %19 {offsets = [0, 0, 0], sizes = [2, 1, 128], strides = [1, 1, 1]} : vector<2x8x128xf32> to vector<2x1x128xf32>
    %24 = vector.shape_cast %23 : vector<2x1x128xf32> to vector<2x128xf32>
    %cst_22 = arith.constant dense<0.000000e+00> : vector<2x128xf32>
    %25 = tpu.matmul %21, %20, %cst_22 {dimension_numbers = #tpu.dot_dimension_numbers<[1], [0], [0], [1], [0, 0, 1, 1], [], []>} : vector<2x32xf32>, vector<32x128xf32>, vector<2x128xf32> -> vector<2x128xf32>
    %26 = arith.addf %24, %25 : vector<2x128xf32>
    %27 = arith.negf %26 : vector<2x128xf32>
    %28 = math.exp %27 : vector<2x128xf32>
    %cst_23 = arith.constant 1.000000e+00 : f32
    %29 = vector.broadcast %cst_23 : f32 to vector<2x128xf32>
    %30 = arith.addf %29, %28 : vector<2x128xf32>
    %31 = arith.divf %29, %30 : vector<2x128xf32>
    %32 = math.tanh %26 : vector<2x128xf32>
    %33 = vector.extract_strided_slice %31 {offsets = [0, 32], sizes = [2, 32], strides = [1, 1]} : vector<2x128xf32> to vector<2x32xf32>
    %34 = arith.mulf %33, %22 : vector<2x32xf32>
    %35 = vector.extract_strided_slice %31 {offsets = [0, 0], sizes = [2, 32], strides = [1, 1]} : vector<2x128xf32> to vector<2x32xf32>
    %36 = vector.extract_strided_slice %32 {offsets = [0, 64], sizes = [2, 32], strides = [1, 1]} : vector<2x128xf32> to vector<2x32xf32>
    %37 = arith.mulf %35, %36 : vector<2x32xf32>
    %38 = arith.addf %34, %37 : vector<2x32xf32>
    %39 = vector.extract_strided_slice %31 {offsets = [0, 96], sizes = [2, 32], strides = [1, 1]} : vector<2x128xf32> to vector<2x32xf32>
    %40 = math.tanh %38 : vector<2x32xf32>
    %41 = arith.mulf %39, %40 : vector<2x32xf32>
    %c0_24 = arith.constant 0 : index
    %c0_25 = arith.constant 0 : index
    %c0_26 = arith.constant 0 : index
    %42 = vector.load %arg18[%c0_24, %c0_25, %c0_26] : memref<2x8x32xf32, #tpu.memory_space<vmem>>, vector<2x1x32xf32>
    %43 = vector.shape_cast %42 : vector<2x1x32xf32> to vector<2x32xf32>
    %44 = vector.shape_cast %41 : vector<2x32xf32> to vector<2x1x32xf32>
    tpu.vector_store %arg18[%c0_24, %c0_25, %c0_26], %44 {strides = array<i32>} : memref<2x8x32xf32, #tpu.memory_space<vmem>>, vector<2x1x32xf32>,
    %45 = vector.extract_strided_slice %19 {offsets = [0, 1, 0], sizes = [2, 1, 128], strides = [1, 1, 1]} : vector<2x8x128xf32> to vector<2x1x128xf32>
    %46 = vector.shape_cast %45 : vector<2x1x128xf32> to vector<2x128xf32>
    %cst_27 = arith.constant dense<0.000000e+00> : vector<2x128xf32>
    %47 = tpu.matmul %41, %20, %cst_27 {dimension_numbers = #tpu.dot_dimension_numbers<[1], [0], [0], [1], [0, 0, 1, 1], [], []>} : vector<2x32xf32>, vector<32x128xf32>, vector<2x128xf32> -> vector<2x128xf32>
    %48 = arith.addf %46, %47 : vector<2x128xf32>
    %49 = arith.negf %48 : vector<2x128xf32>
    %50 = math.exp %49 : vector<2x128xf32>
    %cst_28 = arith.constant 1.000000e+00 : f32
    %51 = vector.broadcast %cst_28 : f32 to vector<2x128xf32>
    %52 = arith.addf %51, %50 : vector<2x128xf32>
    %53 = arith.divf %51, %52 : vector<2x128xf32>
    %54 = math.tanh %48 : vector<2x128xf32>
    %55 = vector.extract_strided_slice %53 {offsets = [0, 32], sizes = [2, 32], strides = [1, 1]} : vector<2x128xf32> to vector<2x32xf32>
    %56 = arith.mulf %55, %38 : vector<2x32xf32>
    %57 = vector.extract_strided_slice %53 {offsets = [0, 0], sizes = [2, 32], strides = [1, 1]} : vector<2x128xf32> to vector<2x32xf32>
    %58 = vector.extract_strided_slice %54 {offsets = [0, 64], sizes = [2, 32], strides = [1, 1]} : vector<2x128xf32> to vector<2x32xf32>
    %59 = arith.mulf %57, %58 : vector<2x32xf32>
    %60 = arith.addf %56, %59 : vector<2x32xf32>
    %61 = vector.extract_strided_slice %53 {offsets = [0, 96], sizes = [2, 32], strides = [1, 1]} : vector<2x128xf32> to vector<2x32xf32>
    %62 = math.tanh %60 : vector<2x32xf32>
    %63 = arith.mulf %61, %62 : vector<2x32xf32>
    %c0_29 = arith.constant 0 : index
    %c1 = arith.constant 1 : index
    %c0_30 = arith.constant 0 : index
    %64 = vector.load %arg18[%c0_29, %c1, %c0_30] : memref<2x8x32xf32, #tpu.memory_space<vmem>>, vector<2x1x32xf32>
    %65 = vector.shape_cast %64 : vector<2x1x32xf32> to vector<2x32xf32>
    %66 = vector.shape_cast %63 : vector<2x32xf32> to vector<2x1x32xf32>
    tpu.vector_store %arg18[%c0_29, %c1, %c0_30], %66 {strides = array<i32>} : memref<2x8x32xf32, #tpu.memory_space<vmem>>, vector<2x1x32xf32>,
    %67 = vector.extract_strided_slice %19 {offsets = [0, 2, 0], sizes = [2, 1, 128], strides = [1, 1, 1]} : vector<2x8x128xf32> to vector<2x1x128xf32>
    %68 = vector.shape_cast %67 : vector<2x1x128xf32> to vector<2x128xf32>
    %cst_31 = arith.constant dense<0.000000e+00> : vector<2x128xf32>
    %69 = tpu.matmul %63, %20, %cst_31 {dimension_numbers = #tpu.dot_dimension_numbers<[1], [0], [0], [1], [0, 0, 1, 1], [], []>} : vector<2x32xf32>, vector<32x128xf32>, vector<2x128xf32> -> vector<2x128xf32>
    %70 = arith.addf %68, %69 : vector<2x128xf32>
    %71 = arith.negf %70 : vector<2x128xf32>
    %72 = math.exp %71 : vector<2x128xf32>
    %cst_32 = arith.constant 1.000000e+00 : f32
    %73 = vector.broadcast %cst_32 : f32 to vector<2x128xf32>
    %74 = arith.addf %73, %72 : vector<2x128xf32>
    %75 = arith.divf %73, %74 : vector<2x128xf32>
    %76 = math.tanh %70 : vector<2x128xf32>
    %77 = vector.extract_strided_slice %75 {offsets = [0, 32], sizes = [2, 32], strides = [1, 1]} : vector<2x128xf32> to vector<2x32xf32>
    %78 = arith.mulf %77, %60 : vector<2x32xf32>
    %79 = vector.extract_strided_slice %75 {offsets = [0, 0], sizes = [2, 32], strides = [1, 1]} : vector<2x128xf32> to vector<2x32xf32>
    %80 = vector.extract_strided_slice %76 {offsets = [0, 64], sizes = [2, 32], strides = [1, 1]} : vector<2x128xf32> to vector<2x32xf32>
    %81 = arith.mulf %79, %80 : vector<2x32xf32>
    %82 = arith.addf %78, %81 : vector<2x32xf32>
    %83 = vector.extract_strided_slice %75 {offsets = [0, 96], sizes = [2, 32], strides = [1, 1]} : vector<2x128xf32> to vector<2x32xf32>
    %84 = math.tanh %82 : vector<2x32xf32>
    %85 = arith.mulf %83, %84 : vector<2x32xf32>
    %c0_33 = arith.constant 0 : index
    %c2 = arith.constant 2 : index
    %c0_34 = arith.constant 0 : index
    %86 = vector.load %arg18[%c0_33, %c2, %c0_34] : memref<2x8x32xf32, #tpu.memory_space<vmem>>, vector<2x1x32xf32>
    %87 = vector.shape_cast %86 : vector<2x1x32xf32> to vector<2x32xf32>
    %88 = vector.shape_cast %85 : vector<2x32xf32> to vector<2x1x32xf32>
    tpu.vector_store %arg18[%c0_33, %c2, %c0_34], %88 {strides = array<i32>} : memref<2x8x32xf32, #tpu.memory_space<vmem>>, vector<2x1x32xf32>,
    %89 = vector.extract_strided_slice %19 {offsets = [0, 3, 0], sizes = [2, 1, 128], strides = [1, 1, 1]} : vector<2x8x128xf32> to vector<2x1x128xf32>
    %90 = vector.shape_cast %89 : vector<2x1x128xf32> to vector<2x128xf32>
    %cst_35 = arith.constant dense<0.000000e+00> : vector<2x128xf32>
    %91 = tpu.matmul %85, %20, %cst_35 {dimension_numbers = #tpu.dot_dimension_numbers<[1], [0], [0], [1], [0, 0, 1, 1], [], []>} : vector<2x32xf32>, vector<32x128xf32>, vector<2x128xf32> -> vector<2x128xf32>
    %92 = arith.addf %90, %91 : vector<2x128xf32>
    %93 = arith.negf %92 : vector<2x128xf32>
    %94 = math.exp %93 : vector<2x128xf32>
    %cst_36 = arith.constant 1.000000e+00 : f32
    %95 = vector.broadcast %cst_36 : f32 to vector<2x128xf32>
    %96 = arith.addf %95, %94 : vector<2x128xf32>
    %97 = arith.divf %95, %96 : vector<2x128xf32>
    %98 = math.tanh %92 : vector<2x128xf32>
    %99 = vector.extract_strided_slice %97 {offsets = [0, 32], sizes = [2, 32], strides = [1, 1]} : vector<2x128xf32> to vector<2x32xf32>
    %100 = arith.mulf %99, %82 : vector<2x32xf32>
    %101 = vector.extract_strided_slice %97 {offsets = [0, 0], sizes = [2, 32], strides = [1, 1]} : vector<2x128xf32> to vector<2x32xf32>
    %102 = vector.extract_strided_slice %98 {offsets = [0, 64], sizes = [2, 32], strides = [1, 1]} : vector<2x128xf32> to vector<2x32xf32>
    %103 = arith.mulf %101, %102 : vector<2x32xf32>
    %104 = arith.addf %100, %103 : vector<2x32xf32>
    %105 = vector.extract_strided_slice %97 {offsets = [0, 96], sizes = [2, 32], strides = [1, 1]} : vector<2x128xf32> to vector<2x32xf32>
    %106 = math.tanh %104 : vector<2x32xf32>
    %107 = arith.mulf %105, %106 : vector<2x32xf32>
    %c0_37 = arith.constant 0 : index
    %c3 = arith.constant 3 : index
    %c0_38 = arith.constant 0 : index
    %108 = vector.load %arg18[%c0_37, %c3, %c0_38] : memref<2x8x32xf32, #tpu.memory_space<vmem>>, vector<2x1x32xf32>
    %109 = vector.shape_cast %108 : vector<2x1x32xf32> to vector<2x32xf32>
    %110 = vector.shape_cast %107 : vector<2x32xf32> to vector<2x1x32xf32>
    tpu.vector_store %arg18[%c0_37, %c3, %c0_38], %110 {strides = array<i32>} : memref<2x8x32xf32, #tpu.memory_space<vmem>>, vector<2x1x32xf32>,
    %111 = vector.extract_strided_slice %19 {offsets = [0, 4, 0], sizes = [2, 1, 128], strides = [1, 1, 1]} : vector<2x8x128xf32> to vector<2x1x128xf32>
    %112 = vector.shape_cast %111 : vector<2x1x128xf32> to vector<2x128xf32>
    %cst_39 = arith.constant dense<0.000000e+00> : vector<2x128xf32>
    %113 = tpu.matmul %107, %20, %cst_39 {dimension_numbers = #tpu.dot_dimension_numbers<[1], [0], [0], [1], [0, 0, 1, 1], [], []>} : vector<2x32xf32>, vector<32x128xf32>, vector<2x128xf32> -> vector<2x128xf32>
    %114 = arith.addf %112, %113 : vector<2x128xf32>
    %115 = arith.negf %114 : vector<2x128xf32>
    %116 = math.exp %115 : vector<2x128xf32>
    %cst_40 = arith.constant 1.000000e+00 : f32
    %117 = vector.broadcast %cst_40 : f32 to vector<2x128xf32>
    %118 = arith.addf %117, %116 : vector<2x128xf32>
    %119 = arith.divf %117, %118 : vector<2x128xf32>
    %120 = math.tanh %114 : vector<2x128xf32>
    %121 = vector.extract_strided_slice %119 {offsets = [0, 32], sizes = [2, 32], strides = [1, 1]} : vector<2x128xf32> to vector<2x32xf32>
    %122 = arith.mulf %121, %104 : vector<2x32xf32>
    %123 = vector.extract_strided_slice %119 {offsets = [0, 0], sizes = [2, 32], strides = [1, 1]} : vector<2x128xf32> to vector<2x32xf32>
    %124 = vector.extract_strided_slice %120 {offsets = [0, 64], sizes = [2, 32], strides = [1, 1]} : vector<2x128xf32> to vector<2x32xf32>
    %125 = arith.mulf %123, %124 : vector<2x32xf32>
    %126 = arith.addf %122, %125 : vector<2x32xf32>
    %127 = vector.extract_strided_slice %119 {offsets = [0, 96], sizes = [2, 32], strides = [1, 1]} : vector<2x128xf32> to vector<2x32xf32>
    %128 = math.tanh %126 : vector<2x32xf32>
    %129 = arith.mulf %127, %128 : vector<2x32xf32>
    %c0_41 = arith.constant 0 : index
    %c4 = arith.constant 4 : index
    %c0_42 = arith.constant 0 : index
    %130 = vector.load %arg18[%c0_41, %c4, %c0_42] : memref<2x8x32xf32, #tpu.memory_space<vmem>>, vector<2x1x32xf32>
    %131 = vector.shape_cast %130 : vector<2x1x32xf32> to vector<2x32xf32>
    %132 = vector.shape_cast %129 : vector<2x32xf32> to vector<2x1x32xf32>
    tpu.vector_store %arg18[%c0_41, %c4, %c0_42], %132 {strides = array<i32>} : memref<2x8x32xf32, #tpu.memory_space<vmem>>, vector<2x1x32xf32>,
    %133 = vector.extract_strided_slice %19 {offsets = [0, 5, 0], sizes = [2, 1, 128], strides = [1, 1, 1]} : vector<2x8x128xf32> to vector<2x1x128xf32>
    %134 = vector.shape_cast %133 : vector<2x1x128xf32> to vector<2x128xf32>
    %cst_43 = arith.constant dense<0.000000e+00> : vector<2x128xf32>
    %135 = tpu.matmul %129, %20, %cst_43 {dimension_numbers = #tpu.dot_dimension_numbers<[1], [0], [0], [1], [0, 0, 1, 1], [], []>} : vector<2x32xf32>, vector<32x128xf32>, vector<2x128xf32> -> vector<2x128xf32>
    %136 = arith.addf %134, %135 : vector<2x128xf32>
    %137 = arith.negf %136 : vector<2x128xf32>
    %138 = math.exp %137 : vector<2x128xf32>
    %cst_44 = arith.constant 1.000000e+00 : f32
    %139 = vector.broadcast %cst_44 : f32 to vector<2x128xf32>
    %140 = arith.addf %139, %138 : vector<2x128xf32>
    %141 = arith.divf %139, %140 : vector<2x128xf32>
    %142 = math.tanh %136 : vector<2x128xf32>
    %143 = vector.extract_strided_slice %141 {offsets = [0, 32], sizes = [2, 32], strides = [1, 1]} : vector<2x128xf32> to vector<2x32xf32>
    %144 = arith.mulf %143, %126 : vector<2x32xf32>
    %145 = vector.extract_strided_slice %141 {offsets = [0, 0], sizes = [2, 32], strides = [1, 1]} : vector<2x128xf32> to vector<2x32xf32>
    %146 = vector.extract_strided_slice %142 {offsets = [0, 64], sizes = [2, 32], strides = [1, 1]} : vector<2x128xf32> to vector<2x32xf32>
    %147 = arith.mulf %145, %146 : vector<2x32xf32>
    %148 = arith.addf %144, %147 : vector<2x32xf32>
    %149 = vector.extract_strided_slice %141 {offsets = [0, 96], sizes = [2, 32], strides = [1, 1]} : vector<2x128xf32> to vector<2x32xf32>
    %150 = math.tanh %148 : vector<2x32xf32>
    %151 = arith.mulf %149, %150 : vector<2x32xf32>
    %c0_45 = arith.constant 0 : index
    %c5 = arith.constant 5 : index
    %c0_46 = arith.constant 0 : index
    %152 = vector.load %arg18[%c0_45, %c5, %c0_46] : memref<2x8x32xf32, #tpu.memory_space<vmem>>, vector<2x1x32xf32>
    %153 = vector.shape_cast %152 : vector<2x1x32xf32> to vector<2x32xf32>
    %154 = vector.shape_cast %151 : vector<2x32xf32> to vector<2x1x32xf32>
    tpu.vector_store %arg18[%c0_45, %c5, %c0_46], %154 {strides = array<i32>} : memref<2x8x32xf32, #tpu.memory_space<vmem>>, vector<2x1x32xf32>,
    %155 = vector.extract_strided_slice %19 {offsets = [0, 6, 0], sizes = [2, 1, 128], strides = [1, 1, 1]} : vector<2x8x128xf32> to vector<2x1x128xf32>
    %156 = vector.shape_cast %155 : vector<2x1x128xf32> to vector<2x128xf32>
    %cst_47 = arith.constant dense<0.000000e+00> : vector<2x128xf32>
    %157 = tpu.matmul %151, %20, %cst_47 {dimension_numbers = #tpu.dot_dimension_numbers<[1], [0], [0], [1], [0, 0, 1, 1], [], []>} : vector<2x32xf32>, vector<32x128xf32>, vector<2x128xf32> -> vector<2x128xf32>
    %158 = arith.addf %156, %157 : vector<2x128xf32>
    %159 = arith.negf %158 : vector<2x128xf32>
    %160 = math.exp %159 : vector<2x128xf32>
    %cst_48 = arith.constant 1.000000e+00 : f32
    %161 = vector.broadcast %cst_48 : f32 to vector<2x128xf32>
    %162 = arith.addf %161, %160 : vector<2x128xf32>
    %163 = arith.divf %161, %162 : vector<2x128xf32>
    %164 = math.tanh %158 : vector<2x128xf32>
    %165 = vector.extract_strided_slice %163 {offsets = [0, 32], sizes = [2, 32], strides = [1, 1]} : vector<2x128xf32> to vector<2x32xf32>
    %166 = arith.mulf %165, %148 : vector<2x32xf32>
    %167 = vector.extract_strided_slice %163 {offsets = [0, 0], sizes = [2, 32], strides = [1, 1]} : vector<2x128xf32> to vector<2x32xf32>
    %168 = vector.extract_strided_slice %164 {offsets = [0, 64], sizes = [2, 32], strides = [1, 1]} : vector<2x128xf32> to vector<2x32xf32>
    %169 = arith.mulf %167, %168 : vector<2x32xf32>
    %170 = arith.addf %166, %169 : vector<2x32xf32>
    %171 = vector.extract_strided_slice %163 {offsets = [0, 96], sizes = [2, 32], strides = [1, 1]} : vector<2x128xf32> to vector<2x32xf32>
    %172 = math.tanh %170 : vector<2x32xf32>
    %173 = arith.mulf %171, %172 : vector<2x32xf32>
    %c0_49 = arith.constant 0 : index
    %c6 = arith.constant 6 : index
    %c0_50 = arith.constant 0 : index
    %174 = vector.load %arg18[%c0_49, %c6, %c0_50] : memref<2x8x32xf32, #tpu.memory_space<vmem>>, vector<2x1x32xf32>
    %175 = vector.shape_cast %174 : vector<2x1x32xf32> to vector<2x32xf32>
    %176 = vector.shape_cast %173 : vector<2x32xf32> to vector<2x1x32xf32>
    tpu.vector_store %arg18[%c0_49, %c6, %c0_50], %176 {strides = array<i32>} : memref<2x8x32xf32, #tpu.memory_space<vmem>>, vector<2x1x32xf32>,
    %177 = vector.extract_strided_slice %19 {offsets = [0, 7, 0], sizes = [2, 1, 128], strides = [1, 1, 1]} : vector<2x8x128xf32> to vector<2x1x128xf32>
    %178 = vector.shape_cast %177 : vector<2x1x128xf32> to vector<2x128xf32>
    %cst_51 = arith.constant dense<0.000000e+00> : vector<2x128xf32>
    %179 = tpu.matmul %173, %20, %cst_51 {dimension_numbers = #tpu.dot_dimension_numbers<[1], [0], [0], [1], [0, 0, 1, 1], [], []>} : vector<2x32xf32>, vector<32x128xf32>, vector<2x128xf32> -> vector<2x128xf32>
    %180 = arith.addf %178, %179 : vector<2x128xf32>
    %181 = arith.negf %180 : vector<2x128xf32>
    %182 = math.exp %181 : vector<2x128xf32>
    %cst_52 = arith.constant 1.000000e+00 : f32
    %183 = vector.broadcast %cst_52 : f32 to vector<2x128xf32>
    %184 = arith.addf %183, %182 : vector<2x128xf32>
    %185 = arith.divf %183, %184 : vector<2x128xf32>
    %186 = math.tanh %180 : vector<2x128xf32>
    %187 = vector.extract_strided_slice %185 {offsets = [0, 32], sizes = [2, 32], strides = [1, 1]} : vector<2x128xf32> to vector<2x32xf32>
    %188 = arith.mulf %187, %170 : vector<2x32xf32>
    %189 = vector.extract_strided_slice %185 {offsets = [0, 0], sizes = [2, 32], strides = [1, 1]} : vector<2x128xf32> to vector<2x32xf32>
    %190 = vector.extract_strided_slice %186 {offsets = [0, 64], sizes = [2, 32], strides = [1, 1]} : vector<2x128xf32> to vector<2x32xf32>
    %191 = arith.mulf %189, %190 : vector<2x32xf32>
    %192 = arith.addf %188, %191 : vector<2x32xf32>
    %193 = vector.extract_strided_slice %185 {offsets = [0, 96], sizes = [2, 32], strides = [1, 1]} : vector<2x128xf32> to vector<2x32xf32>
    %194 = math.tanh %192 : vector<2x32xf32>
    %195 = arith.mulf %193, %194 : vector<2x32xf32>
    %c0_53 = arith.constant 0 : index
    %c7 = arith.constant 7 : index
    %c0_54 = arith.constant 0 : index
    %196 = vector.load %arg18[%c0_53, %c7, %c0_54] : memref<2x8x32xf32, #tpu.memory_space<vmem>>, vector<2x1x32xf32>
    %197 = vector.shape_cast %196 : vector<2x1x32xf32> to vector<2x32xf32>
    %198 = vector.shape_cast %195 : vector<2x32xf32> to vector<2x1x32xf32>
    tpu.vector_store %arg18[%c0_53, %c7, %c0_54], %198 {strides = array<i32>} : memref<2x8x32xf32, #tpu.memory_space<vmem>>, vector<2x1x32xf32>,
    %c0_55 = arith.constant 0 : index
    %c0_56 = arith.constant 0 : index
    %199 = vector.load %arg16[%c0_55, %c0_56] : memref<2x32xf32, #tpu.memory_space<vmem>>, vector<2x32xf32>
    tpu.vector_store %arg16[%c0_55, %c0_56], %195 {strides = array<i32>} : memref<2x32xf32, #tpu.memory_space<vmem>>, vector<2x32xf32>,
    %c0_57 = arith.constant 0 : index
    %c0_58 = arith.constant 0 : index
    %200 = vector.load %arg17[%c0_57, %c0_58] : memref<2x32xf32, #tpu.memory_space<vmem>>, vector<2x32xf32>
    tpu.vector_store %arg17[%c0_57, %c0_58], %192 {strides = array<i32>} : memref<2x32xf32, #tpu.memory_space<vmem>>, vector<2x32xf32>,
    %c0_59 = arith.constant 0 : index
    %c0_60 = arith.constant 0 : index
    %c0_61 = arith.constant 0 : index
    %201 = vector.load %arg18[%c0_59, %c0_60, %c0_61] : memref<2x8x32xf32, #tpu.memory_space<vmem>>, vector<2x8x32xf32>
    %202 = vector.shape_cast %201 : vector<2x8x32xf32> to vector<16x32xf32>
    %cst_62 = arith.constant 0.000000e+00 : f32
    %203 = vector.broadcast %cst_62 : f32 to vector<16x32xf32>
    %204 = arith.cmpf oge, %202, %203 : vector<16x32xf32>
    %cst_63 = arith.constant 0.00999999977 : f32
    %205 = vector.broadcast %cst_63 : f32 to vector<16x32xf32>
    %206 = arith.mulf %205, %202 : vector<16x32xf32>
    %207 = arith.select %204, %202, %206 : vector<16x32xi1>, vector<16x32xf32>
    %c0_64 = arith.constant 0 : index
    %c0_65 = arith.constant 0 : index
    %208 = vector.load %arg10[%c0_64, %c0_65] : memref<32x32xf32, #tpu.memory_space<vmem>>, vector<32x32xf32>
    %cst_66 = arith.constant dense<0.000000e+00> : vector<16x32xf32>
    %209 = tpu.matmul %207, %208, %cst_66 {dimension_numbers = #tpu.dot_dimension_numbers<[1], [0], [0], [1], [0, 0, 1, 1], [], []>} : vector<16x32xf32>, vector<32x32xf32>, vector<16x32xf32> -> vector<16x32xf32>
    %c0_67 = arith.constant 0 : index
    %c0_68 = arith.constant 0 : index
    %210 = vector.load %arg11[%c0_67, %c0_68] : memref<1x32xf32, #tpu.memory_space<vmem>>, vector<1x32xf32>
    %211 = vector.broadcast %210 : vector<1x32xf32> to vector<16x32xf32>
    %212 = arith.addf %209, %211 : vector<16x32xf32>
    %cst_69 = arith.constant 0.000000e+00 : f32
    %213 = vector.broadcast %cst_69 : f32 to vector<16x32xf32>
    %214 = arith.cmpf oge, %212, %213 : vector<16x32xf32>
    %cst_70 = arith.constant 0.00999999977 : f32
    %215 = vector.broadcast %cst_70 : f32 to vector<16x32xf32>
    %216 = arith.mulf %215, %212 : vector<16x32xf32>
    %217 = arith.select %214, %212, %216 : vector<16x32xi1>, vector<16x32xf32>
    %c0_71 = arith.constant 0 : index
    %c0_72 = arith.constant 0 : index
    %218 = vector.load %arg12[%c0_71, %c0_72] : memref<32x16xf32, #tpu.memory_space<vmem>>, vector<32x16xf32>
    %cst_73 = arith.constant dense<0.000000e+00> : vector<16x16xf32>
    %219 = tpu.matmul %217, %218, %cst_73 {dimension_numbers = #tpu.dot_dimension_numbers<[1], [0], [0], [1], [0, 0, 1, 1], [], []>} : vector<16x32xf32>, vector<32x16xf32>, vector<16x16xf32> -> vector<16x16xf32>
    %c0_74 = arith.constant 0 : index
    %c0_75 = arith.constant 0 : index
    %220 = vector.load %arg13[%c0_74, %c0_75] : memref<4x16xf32, #tpu.memory_space<vmem>>, vector<4x16xf32>
    %cst_76 = arith.constant dense<0.000000e+00> : vector<16x16xf32>
    %221 = tpu.matmul %3, %220, %cst_76 {dimension_numbers = #tpu.dot_dimension_numbers<[1], [0], [0], [1], [0, 0, 1, 1], [], []>} : vector<16x4xf32>, vector<4x16xf32>, vector<16x16xf32> -> vector<16x16xf32>
    %222 = arith.addf %219, %221 : vector<16x16xf32>
    %c0_77 = arith.constant 0 : index
    %c0_78 = arith.constant 0 : index
    %223 = vector.load %arg14[%c0_77, %c0_78] : memref<1x16xf32, #tpu.memory_space<vmem>>, vector<1x16xf32>
    %224 = vector.broadcast %223 : vector<1x16xf32> to vector<16x16xf32>
    %225 = arith.addf %222, %224 : vector<16x16xf32>
    %226 = vector.shape_cast %225 : vector<16x16xf32> to vector<2x8x16xf32>
    %c0_79 = arith.constant 0 : index
    %c0_80 = arith.constant 0 : index
    %c0_81 = arith.constant 0 : index
    %227 = vector.load %arg15[%c0_79, %c0_80, %c0_81] : memref<2x8x16xf32, #tpu.memory_space<vmem>>, vector<2x8x16xf32>
    tpu.vector_store %arg15[%c0_79, %c0_80, %c0_81], %226 {strides = array<i32>} : memref<2x8x16xf32, #tpu.memory_space<vmem>>, vector<2x8x16xf32>,
    return
  }
  func.func @transform_0(%arg0: i32) -> (i32, i32, i32) {
    %c0_i32 = arith.constant 0 : i32
    %c0_i32_0 = arith.constant 0 : i32
    %c0_i32_1 = arith.constant 0 : i32
    return %arg0, %c0_i32, %c0_i32_0 : i32, i32, i32
  }
  func.func @transform_1(%arg0: i32) -> (i32, i32, i32) {
    %c0_i32 = arith.constant 0 : i32
    %c0_i32_0 = arith.constant 0 : i32
    %c0_i32_1 = arith.constant 0 : i32
    return %arg0, %c0_i32, %c0_i32_0 : i32, i32, i32
  }
  func.func @transform_2(%arg0: i32) -> (i32, i32) {
    %c0_i32 = arith.constant 0 : i32
    %c0_i32_0 = arith.constant 0 : i32
    return %arg0, %c0_i32 : i32, i32
  }
  func.func @transform_3(%arg0: i32) -> (i32, i32) {
    %c0_i32 = arith.constant 0 : i32
    %c0_i32_0 = arith.constant 0 : i32
    return %arg0, %c0_i32 : i32, i32
  }
  func.func @transform_4(%arg0: i32) -> (i32, i32) {
    %c0_i32 = arith.constant 0 : i32
    %c0_i32_0 = arith.constant 0 : i32
    %c0_i32_1 = arith.constant 0 : i32
    return %c0_i32, %c0_i32_0 : i32, i32
  }
  func.func @transform_5(%arg0: i32) -> (i32, i32) {
    %c0_i32 = arith.constant 0 : i32
    %c0_i32_0 = arith.constant 0 : i32
    %c0_i32_1 = arith.constant 0 : i32
    return %c0_i32, %c0_i32_0 : i32, i32
  }
  func.func @transform_6(%arg0: i32) -> (i32, i32) {
    %c0_i32 = arith.constant 0 : i32
    %c0_i32_0 = arith.constant 0 : i32
    %c0_i32_1 = arith.constant 0 : i32
    return %c0_i32, %c0_i32_0 : i32, i32
  }
  func.func @transform_7(%arg0: i32) -> (i32, i32) {
    %c0_i32 = arith.constant 0 : i32
    %c0_i32_0 = arith.constant 0 : i32
    %c0_i32_1 = arith.constant 0 : i32
    return %c0_i32, %c0_i32_0 : i32, i32
  }
  func.func @transform_8(%arg0: i32) -> (i32, i32) {
    %c0_i32 = arith.constant 0 : i32
    %c0_i32_0 = arith.constant 0 : i32
    %c0_i32_1 = arith.constant 0 : i32
    return %c0_i32, %c0_i32_0 : i32, i32
  }
  func.func @transform_9(%arg0: i32) -> (i32, i32) {
    %c0_i32 = arith.constant 0 : i32
    %c0_i32_0 = arith.constant 0 : i32
    %c0_i32_1 = arith.constant 0 : i32
    return %c0_i32, %c0_i32_0 : i32, i32
  }
  func.func @transform_10(%arg0: i32) -> (i32, i32) {
    %c0_i32 = arith.constant 0 : i32
    %c0_i32_0 = arith.constant 0 : i32
    %c0_i32_1 = arith.constant 0 : i32
    return %c0_i32, %c0_i32_0 : i32, i32
  }
  func.func @transform_11(%arg0: i32) -> (i32, i32) {
    %c0_i32 = arith.constant 0 : i32
    %c0_i32_0 = arith.constant 0 : i32
    %c0_i32_1 = arith.constant 0 : i32
    return %c0_i32, %c0_i32_0 : i32, i32
  }
  func.func @transform_12(%arg0: i32) -> (i32, i32) {
    %c0_i32 = arith.constant 0 : i32
    %c0_i32_0 = arith.constant 0 : i32
    %c0_i32_1 = arith.constant 0 : i32
    return %c0_i32, %c0_i32_0 : i32, i32
  }
  func.func @transform_13(%arg0: i32) -> (i32, i32) {
    %c0_i32 = arith.constant 0 : i32
    %c0_i32_0 = arith.constant 0 : i32
    %c0_i32_1 = arith.constant 0 : i32
    return %c0_i32, %c0_i32_0 : i32, i32
  }
  func.func @transform_14(%arg0: i32) -> (i32, i32, i32) {
    %c0_i32 = arith.constant 0 : i32
    %c0_i32_0 = arith.constant 0 : i32
    %c0_i32_1 = arith.constant 0 : i32
    return %arg0, %c0_i32, %c0_i32_0 : i32, i32, i32
  }
  func.func @transform_15(%arg0: i32) -> (i32, i32) {
    %c0_i32 = arith.constant 0 : i32
    %c0_i32_0 = arith.constant 0 : i32
    return %arg0, %c0_i32 : i32, i32
  }
  func.func @transform_16(%arg0: i32) -> (i32, i32) {
    %c0_i32 = arith.constant 0 : i32
    %c0_i32_0 = arith.constant 0 : i32
    return %arg0, %c0_i32 : i32, i32
  }
}

</mosaic_0001>

<llo_original>
// kernel: tpu_custom_call.1
$region0: #{tpu_custom_call.1}
  #allocation0 [shape = 'u32[]', space=smem, size = 0x4, offset = 0x4, fixed_abs, tag = 'smem constant byte address 0x4 - core index']
  #allocation1 [shape = 'u32[144,128]{1,0:T(1,128)}', space=vmem, size = 0x12000, scoped, tag = 'internal scratch']
  #allocation2 [shape = 'f32[2,8,32]{2,1,0:T(8,128)}', space=vmem, size = 0x2000, scoped, tag = 'scratch operand']
  %s0 = inlined_call_operand.hbm [shape: f32[2,8,16], index: 0, kind: input, shape index: {}]
  %s1 = inlined_call_operand.vmem [shape: f32[2,8,4], index: 1, kind: input, shape index: {}]
  %s2 = inlined_call_operand.hbm [shape: f32[2,32], index: 2, kind: input, shape index: {}]
  %s3 = inlined_call_operand.hbm [shape: f32[2,32], index: 3, kind: input, shape index: {}]
  %s4 = inlined_call_operand.hbm [shape: f32[16,32], index: 4, kind: input, shape index: {}]
  %s5 = inlined_call_operand.hbm [shape: f32[1,32], index: 5, kind: input, shape index: {}]
  %s6 = inlined_call_operand.vmem [shape: f32[32,128], index: 6, kind: input, shape index: {}]
  %s7 = inlined_call_operand.vmem [shape: f32[32,128], index: 7, kind: input, shape index: {}]
  %s8 = inlined_call_operand.vmem [shape: f32[1,128], index: 8, kind: input, shape index: {}]
  %s9 = inlined_call_operand.hbm [shape: f32[32,32], index: 9, kind: input, shape index: {}]
  %s10 = inlined_call_operand.vmem [shape: f32[1,32], index: 10, kind: input, shape index: {}]
  %s11 = inlined_call_operand.vmem [shape: f32[32,16], index: 11, kind: input, shape index: {}]
  %s12 = inlined_call_operand.vmem [shape: f32[4,16], index: 12, kind: input, shape index: {}]
  %s13 = inlined_call_operand.vmem [shape: f32[1,16], index: 13, kind: input, shape index: {}]
  %s14 = inlined_call_operand.hbm [shape: f32[2,8,16], index: 14, kind: output, shape index: {0}]
  %s15 = inlined_call_operand.hbm [shape: f32[2,32], index: 15, kind: output, shape index: {1}]
  %s16 = inlined_call_operand.hbm [shape: f32[2,32], index: 16, kind: output, shape index: {2}]
  %17 = xla_tuple %s14, %s15, %s16
  %s18 = sld [smem:[#allocation0]]
  $region106: #{tpu_custom_call.1} parent=0
    _
  %s20 = ssub.s32 1, %s18
  %s21 = scalar_select 0, %s20, %s18
  $region1: #{tpu_custom_call.1} parent=0
    #allocation3 [shape = 'u8[8192]{0}', space=vmem, size = 0x2000, scoped, tag = 'input window, operand 0, single buffered']
    #allocation4 [shape = 's32[1]{0}', space=sflag, size = 0x4, scoped, tag = 'scoped memory for tpu_custom_call.1']
    #allocation5 [shape = 's32[1]{0}', space=sflag, size = 0x4, scoped, tag = 'scoped memory for tpu_custom_call.1']
    #allocation6 [shape = 'u8[1024]{0}', space=vmem, size = 0x400, scoped, tag = 'input window, operand 2, single buffered']
    #allocation7 [shape = 's32[1]{0}', space=sflag, size = 0x4, scoped, tag = 'scoped memory for tpu_custom_call.1']
    #allocation8 [shape = 'u8[1024]{0}', space=vmem, size = 0x400, scoped, tag = 'input window, operand 3, single buffered']
    #allocation9 [shape = 'u8[8192]{0}', space=vmem, size = 0x2000, scoped, tag = 'input window, operand 4, single buffered']
    #allocation10 [shape = 's32[1]{0}', space=sflag, size = 0x4, scoped, tag = 'scoped memory for tpu_custom_call.1']
    #allocation11 [shape = 'u8[512]{0}', space=vmem, size = 0x400, scoped, tag = 'input window, operand 5, single buffered']
    #allocation12 [shape = 'u8[16384]{0}', space=vmem, size = 0x4000, scoped, tag = 'input window, operand 9, single buffered']
    #allocation13 [shape = 's32[1]{0}', space=sflag, size = 0x4, scoped, tag = 'scoped memory for tpu_custom_call.1']
    #allocation14 [shape = 'u8[8192]{0}', space=vmem, size = 0x2000, scoped, tag = 'output window, operand 0, single buffered']
    #allocation15 [shape = 'u8[1024]{0}', space=vmem, size = 0x400, scoped, tag = 'output window, operand 1, single buffered']
    #allocation16 [shape = 's32[1]{0}', space=sflag, size = 0x4, scoped, tag = 'scoped memory for tpu_custom_call.1']
    #allocation17 [shape = 'u8[1024]{0}', space=vmem, size = 0x400, scoped, tag = 'output window, operand 2, single buffered']
    %22 = vsyncpa [#allocation4], 0
    %23 = vsyncpa [#allocation7], 0
    %24 = vsyncpa [#allocation10], 0
    %25 = vsyncpa [#allocation13], 0
    %26 = vsyncpa [#allocation5], 0
    %27 = vsyncpa [#allocation16], 0
    // Predicated region
    $region2: #{tpu_custom_call.1} parent=1 // pred_check
      _
    $region3: #{tpu_custom_call.1} parent=1 // pred_check_branch
      %29 = sbr.rel (0) target = $region5
    $region4: #{tpu_custom_call.1} parent=1 // pred_region
      %s31 = ssub.s32 256, 256
      %32 = vsyncadd [#allocation4], %s31
      %s33 = sshll.u32 [#allocation3], 4
      %s34 = int_to_ptr.vmem [resolvable:$true] %s33
      %39 = dma.hbm_to_vmem [thread:$0]  %s0, 256, %s34, [#allocation4], 128, 128, 8
    $region5: #{tpu_custom_call.1} parent=1 // pred_fallthru
      _
    // Predicated region
    $region6: #{tpu_custom_call.1} parent=1 // pred_check
      _
    $region7: #{tpu_custom_call.1} parent=1 // pred_check_branch
      %41 = sbr.rel (0) target = $region9
    $region8: #{tpu_custom_call.1} parent=1 // pred_region
      _
    $region9: #{tpu_custom_call.1} parent=1 // pred_fallthru
      _
    // Predicated region
    $region10: #{tpu_custom_call.1} parent=1 // pred_check
      _
    $region11: #{tpu_custom_call.1} parent=1 // pred_check_branch
      %43 = sbr.rel (0) target = $region13
    $region12: #{tpu_custom_call.1} parent=1 // pred_region
      %s45 = ssub.s32 32, 32
      %46 = vsyncadd [#allocation7], %s45
      %s48 = sshll.u32 [#allocation6], 4
      %s49 = int_to_ptr.vmem [resolvable:$true] %s48
      %51 = dma.hbm_to_vmem [thread:$0]  %s2, 32, %s49, [#allocation7]
    $region13: #{tpu_custom_call.1} parent=1 // pred_fallthru
      _
    // Predicated region
    $region14: #{tpu_custom_call.1} parent=1 // pred_check
      _
    $region15: #{tpu_custom_call.1} parent=1 // pred_check_branch
      %53 = sbr.rel (0) target = $region17
    $region16: #{tpu_custom_call.1} parent=1 // pred_region
      %s55 = ssub.s32 32, 32
      %56 = vsyncadd [#allocation7], %s55
      %s58 = sshll.u32 [#allocation8], 4
      %s59 = int_to_ptr.vmem [resolvable:$true] %s58
      %61 = dma.hbm_to_vmem [thread:$0]  %s3, 32, %s59, [#allocation7]
    $region17: #{tpu_custom_call.1} parent=1 // pred_fallthru
      _
    // Predicated region
    $region18: #{tpu_custom_call.1} parent=1 // pred_check
      _
    $region19: #{tpu_custom_call.1} parent=1 // pred_check_branch
      %63 = sbr.rel (0) target = $region21
    $region20: #{tpu_custom_call.1} parent=1 // pred_region
      %s65 = ssub.s32 256, 256
      %66 = vsyncadd [#allocation10], %s65
      %s67 = sshll.u32 [#allocation9], 4
      %s68 = int_to_ptr.vmem [resolvable:$true] %s67
      %73 = dma.hbm_to_vmem [thread:$0]  %s4, 256, %s68, [#allocation10], 128, 128, 8
    $region21: #{tpu_custom_call.1} parent=1 // pred_fallthru
      _
    // Predicated region
    $region22: #{tpu_custom_call.1} parent=1 // pred_check
      _
    $region23: #{tpu_custom_call.1} parent=1 // pred_check_branch
      %75 = sbr.rel (0) target = $region25
    $region24: #{tpu_custom_call.1} parent=1 // pred_region
      %s77 = ssub.s32 16, 16
      %78 = vsyncadd [#allocation10], %s77
      %s80 = sshll.u32 [#allocation11], 4
      %s81 = int_to_ptr.vmem [resolvable:$true] %s80
      %83 = dma.hbm_to_vmem [thread:$0]  %s5, 16, %s81, [#allocation10]
    $region25: #{tpu_custom_call.1} parent=1 // pred_fallthru
      _
    // Predicated region
    $region26: #{tpu_custom_call.1} parent=1 // pred_check
      _
    $region27: #{tpu_custom_call.1} parent=1 // pred_check_branch
      %85 = sbr.rel (0) target = $region29
    $region28: #{tpu_custom_call.1} parent=1 // pred_region
      _
    $region29: #{tpu_custom_call.1} parent=1 // pred_fallthru
      _
    // Predicated region
    $region30: #{tpu_custom_call.1} parent=1 // pred_check
      _
    $region31: #{tpu_custom_call.1} parent=1 // pred_check_branch
      %87 = sbr.rel (0) target = $region33
    $region32: #{tpu_custom_call.1} parent=1 // pred_region
      _
    $region33: #{tpu_custom_call.1} parent=1 // pred_fallthru
      _
    // Predicated region
    $region34: #{tpu_custom_call.1} parent=1 // pred_check
      _
    $region35: #{tpu_custom_call.1} parent=1 // pred_check_branch
      %89 = sbr.rel (0) target = $region37
    $region36: #{tpu_custom_call.1} parent=1 // pred_region
      _
    $region37: #{tpu_custom_call.1} parent=1 // pred_fallthru
      _
    // Predicated region
    $region38: #{tpu_custom_call.1} parent=1 // pred_check
      _
    $region39: #{tpu_custom_call.1} parent=1 // pred_check_branch
      %91 = sbr.rel (0) target = $region41
    $region40: #{tpu_custom_call.1} parent=1 // pred_region
      %s93 = ssub.s32 512, 512
      %94 = vsyncadd [#allocation13], %s93
      %s95 = sshll.u32 [#allocation12], 4
      %s96 = int_to_ptr.vmem [resolvable:$true] %s95
      %101 = dma.hbm_to_vmem [thread:$0]  %s9, 512, %s96, [#allocation13], 128, 128, 8
    $region41: #{tpu_custom_call.1} parent=1 // pred_fallthru
      _
    // Predicated region
    $region42: #{tpu_custom_call.1} parent=1 // pred_check
      _
    $region43: #{tpu_custom_call.1} parent=1 // pred_check_branch
      %103 = sbr.rel (0) target = $region45
    $region44: #{tpu_custom_call.1} parent=1 // pred_region
      _
    $region45: #{tpu_custom_call.1} parent=1 // pred_fallthru
      _
    // Predicated region
    $region46: #{tpu_custom_call.1} parent=1 // pred_check
      _
    $region47: #{tpu_custom_call.1} parent=1 // pred_check_branch
      %105 = sbr.rel (0) target = $region49
    $region48: #{tpu_custom_call.1} parent=1 // pred_region
      _
    $region49: #{tpu_custom_call.1} parent=1 // pred_fallthru
      _
    // Predicated region
    $region50: #{tpu_custom_call.1} parent=1 // pred_check
      _
    $region51: #{tpu_custom_call.1} parent=1 // pred_check_branch
      %107 = sbr.rel (0) target = $region53
    $region52: #{tpu_custom_call.1} parent=1 // pred_region
      _
    $region53: #{tpu_custom_call.1} parent=1 // pred_fallthru
      _
    // Predicated region
    $region54: #{tpu_custom_call.1} parent=1 // pred_check
      _
    $region55: #{tpu_custom_call.1} parent=1 // pred_check_branch
      %109 = sbr.rel (0) target = $region57
    $region56: #{tpu_custom_call.1} parent=1 // pred_region
      _
    $region57: #{tpu_custom_call.1} parent=1 // pred_fallthru
      _
    // Predicated region
    $region58: #{tpu_custom_call.1} parent=1 // pred_check
      _
    $region59: #{tpu_custom_call.1} parent=1 // pred_check_branch
      %111 = sbr.rel (0) target = $region61
    $region60: #{tpu_custom_call.1} parent=1 // pred_region
      %112 = dma.done [#allocation4], 256
    $region61: #{tpu_custom_call.1} parent=1 // pred_fallthru
      _
    // Predicated region
    $region62: #{tpu_custom_call.1} parent=1 // pred_check
      _
    $region63: #{tpu_custom_call.1} parent=1 // pred_check_branch
      %114 = sbr.rel (0) target = $region65
    $region64: #{tpu_custom_call.1} parent=1 // pred_region
      %115 = dma.done [#allocation7], 32
    $region65: #{tpu_custom_call.1} parent=1 // pred_fallthru
      _
    // Predicated region
    $region66: #{tpu_custom_call.1} parent=1 // pred_check
      _
    $region67: #{tpu_custom_call.1} parent=1 // pred_check_branch
      %117 = sbr.rel (0) target = $region69
    $region68: #{tpu_custom_call.1} parent=1 // pred_region
      %118 = dma.done [#allocation7], 32
    $region69: #{tpu_custom_call.1} parent=1 // pred_fallthru
      _
    // Predicated region
    $region70: #{tpu_custom_call.1} parent=1 // pred_check
      _
    $region71: #{tpu_custom_call.1} parent=1 // pred_check_branch
      %120 = sbr.rel (0) target = $region73
    $region72: #{tpu_custom_call.1} parent=1 // pred_region
      %121 = dma.done [#allocation10], 256
    $region73: #{tpu_custom_call.1} parent=1 // pred_fallthru
      _
    // Predicated region
    $region74: #{tpu_custom_call.1} parent=1 // pred_check
      _
    $region75: #{tpu_custom_call.1} parent=1 // pred_check_branch
      %123 = sbr.rel (0) target = $region77
    $region76: #{tpu_custom_call.1} parent=1 // pred_region
      %124 = dma.done [#allocation10], 16
    $region77: #{tpu_custom_call.1} parent=1 // pred_fallthru
      _
    // Predicated region
    $region78: #{tpu_custom_call.1} parent=1 // pred_check
      _
    $region79: #{tpu_custom_call.1} parent=1 // pred_check_branch
      %126 = sbr.rel (0) target = $region81
    $region80: #{tpu_custom_call.1} parent=1 // pred_region
      %127 = dma.done [#allocation13], 512
    $region81: #{tpu_custom_call.1} parent=1 // pred_fallthru
      _
    %v128 = vld [vmem:[#allocation3] sm:$0xff]
    %v129 = vld [vmem:[#allocation3 + $0x8] sm:$0xff]
    %v130 = vld [vmem:[%s1] sm:$0xff]
    %v131 = vld [vmem:[%s1 + $0x8] sm:$0xff]
    %v132 = vld [vmem:[#allocation9] sm:$0xff]
    %v133 = vld [vmem:[#allocation9 + $0x8] sm:$0xff]
    %v134 = vld [vmem:[#allocation11] sm:$0x1]
    %v136 = vlaneseq
    %v137 = vshrl.u32 %v136, 7
    %v138 = vsub.s32 0, %v137
    %v139 = vrot.slane %v134, %v138
    %vm141 = vcmask 130048
    %v143 = vsel %vm141, %v128, 0
    %v146 = vsel %vm141, %v129, 0
    %148 = vmatprep.subr.mxu0 0.0
    %149 = vmatpush1.msra.mxu0 0.0
    %150 = vmatprep.subr.mxu0 0.0
    %151 = vmatpush1.msra.mxu0 0.0
    %152 = vmatprep.subr.mxu0 0.0
    %153 = vmatpush1.msra.mxu0 0.0
    %154 = vmatprep.subr.mxu0 0.0
    %155 = vmatpush1.msra.mxu0 0.0
    %156 = vmatprep.subr.mxu0 0.0
    %157 = vmatpush1.msra.mxu0 0.0
    %158 = vmatprep.subr.mxu0 0.0
    %159 = vmatpush1.msra.mxu0 0.0
    %160 = vmatprep.subr.mxu0 0.0
    %161 = vmatpush1.msra.mxu0 0.0
    %162 = vmatprep.subr.mxu0 0.0
    %163 = vmatpush1.msra.mxu0 0.0
    %164 = vmatprep.subr.mxu0 0.0
    %165 = vmatpush1.msra.mxu0 0.0
    %166 = vmatprep.subr.mxu0 0.0
    %167 = vmatpush1.msra.mxu0 0.0
    %168 = vmatprep.subr.mxu0 0.0
    %169 = vmatpush1.msra.mxu0 0.0
    %170 = vmatprep.subr.mxu0 0.0
    %171 = vmatpush1.msra.mxu0 0.0
    %172 = vmatprep.subr.mxu0 0.0
    %173 = vmatpush1.msra.mxu0 0.0
    %174 = vmatprep.subr.mxu0 0.0
    %175 = vmatpush1.msra.mxu0 0.0
    %176 = vmatprep.subr.mxu0 0.0
    %177 = vmatpush1.msra.mxu0 %v133
    %178 = vmatprep.subr.mxu0 0.0
    %179 = vmatpush1.msra.mxu0 %v132
    %180 = vmatprep.subr.mxu0 0.0
    %181 = vmatpush2.msra.mxu0 0.0
    %182 = vmatprep.subr.mxu0 0.0
    %183 = vmatpush2.msra.mxu0 0.0
    %184 = vmatprep.subr.mxu0 0.0
    %185 = vmatpush2.msra.mxu0 0.0
    %186 = vmatprep.subr.mxu0 0.0
    %187 = vmatpush2.msra.mxu0 0.0
    %188 = vmatprep.subr.mxu0 0.0
    %189 = vmatpush2.msra.mxu0 0.0
    %190 = vmatprep.subr.mxu0 0.0
    %191 = vmatpush2.msra.mxu0 0.0
    %192 = vmatprep.subr.mxu0 0.0
    %193 = vmatpush2.msra.mxu0 0.0
    %194 = vmatprep.subr.mxu0 0.0
    %195 = vmatpush2.msra.mxu0 0.0
    %196 = vmatprep.subr.mxu0 0.0
    %197 = vmatpush2.msra.mxu0 0.0
    %198 = vmatprep.subr.mxu0 0.0
    %199 = vmatpush2.msra.mxu0 0.0
    %200 = vmatprep.subr.mxu0 0.0
    %201 = vmatpush2.msra.mxu0 0.0
    %202 = vmatprep.subr.mxu0 0.0
    %203 = vmatpush2.msra.mxu0 0.0
    %204 = vmatprep.subr.mxu0 0.0
    %205 = vmatpush2.msra.mxu0 0.0
    %206 = vmatprep.subr.mxu0 0.0
    %207 = vmatpush2.msra.mxu0 0.0
    %208 = vmatprep.subr.mxu0 0.0
    %209 = vmatpush2.msra.mxu0 0.0
    %210 = vmatprep.subr.mxu0 0.0
    %211 = vmatpush2.msra.mxu0 0.0
    %212 = vmatprep.mubr.f32.mxu0 0.0
    %213 = vmatmul.mubr.f32.gmra.mxu0 %v143
    %v214 = vpop.f32.mrf.mxu0
    %v215 = vadd.f32 %v139, %v214
    %v216 = vpop.f32.mrf.mxu0
    %217 = vmatprep.mubr.f32.mxu0 0.0
    %218 = vmatmul.mubr.f32.gmra.mxu0 %v146
    %v219 = vpop.f32.mrf.mxu0
    %v220 = vadd.f32 %v139, %v219
    %v221 = vpop.f32.mrf.mxu0
    %222 = vdwg.mxu0
    %vm223 = vcmp.ge.f32.partialorder %v215, 0.0
    %vm224 = vcmp.ge.f32.partialorder %v220, 0.0
    %v225 = vmul.f32 %v215, 0.01
    %v226 = vmul.f32 %v220, 0.01
    %v227 = vsel %vm223, %v215, %v225
    %v228 = vsel %vm224, %v220, %v226
    %v229 = vld [vmem:[%s6] sm:$0xff]
    %v230 = vld [vmem:[%s6 + $0x8] sm:$0xff]
    %v231 = vld [vmem:[%s6 + $0x10] sm:$0xff]
    %v232 = vld [vmem:[%s6 + $0x18] sm:$0xff]
    %v233 = vld [vmem:[%s8] sm:$0x1]
    %v235 = vlaneseq
    %v236 = vshrl.u32 %v235, 7
    %v237 = vsub.s32 0, %v236
    %v238 = vrot.slane %v233, %v237
    %vm240 = vcmask 261120
    %v242 = vsel %vm240, %v227, 0
    %v245 = vsel %vm240, %v228, 0
    %247 = vmatprep.subr.mxu0 0.0
    %248 = vmatpush1.msra.mxu0 0.0
    %249 = vmatprep.subr.mxu0 0.0
    %250 = vmatpush1.msra.mxu0 0.0
    %251 = vmatprep.subr.mxu0 0.0
    %252 = vmatpush1.msra.mxu0 0.0
    %253 = vmatprep.subr.mxu0 0.0
    %254 = vmatpush1.msra.mxu0 0.0
    %255 = vmatprep.subr.mxu0 0.0
    %256 = vmatpush1.msra.mxu0 0.0
    %257 = vmatprep.subr.mxu0 0.0
    %258 = vmatpush1.msra.mxu0 0.0
    %259 = vmatprep.subr.mxu0 0.0
    %260 = vmatpush1.msra.mxu0 0.0
    %261 = vmatprep.subr.mxu0 0.0
    %262 = vmatpush1.msra.mxu0 0.0
    %263 = vmatprep.subr.mxu0 0.0
    %264 = vmatpush1.msra.mxu0 0.0
    %265 = vmatprep.subr.mxu0 0.0
    %266 = vmatpush1.msra.mxu0 0.0
    %267 = vmatprep.subr.mxu0 0.0
    %268 = vmatpush1.msra.mxu0 0.0
    %269 = vmatprep.subr.mxu0 0.0
    %270 = vmatpush1.msra.mxu0 0.0
    %271 = vmatprep.subr.mxu0 0.0
    %272 = vmatpush1.msra.mxu0 %v232
    %273 = vmatprep.subr.mxu0 0.0
    %274 = vmatpush1.msra.mxu0 %v231
    %275 = vmatprep.subr.mxu0 0.0
    %276 = vmatpush1.msra.mxu0 %v230
    %277 = vmatprep.subr.mxu0 0.0
    %278 = vmatpush1.msra.mxu0 %v229
    %279 = vmatprep.subr.mxu0 0.0
    %280 = vmatpush2.msra.mxu0 0.0
    %281 = vmatprep.subr.mxu0 0.0
    %282 = vmatpush2.msra.mxu0 0.0
    %283 = vmatprep.subr.mxu0 0.0
    %284 = vmatpush2.msra.mxu0 0.0
    %285 = vmatprep.subr.mxu0 0.0
    %286 = vmatpush2.msra.mxu0 0.0
    %287 = vmatprep.subr.mxu0 0.0
    %288 = vmatpush2.msra.mxu0 0.0
    %289 = vmatprep.subr.mxu0 0.0
    %290 = vmatpush2.msra.mxu0 0.0
    %291 = vmatprep.subr.mxu0 0.0
    %292 = vmatpush2.msra.mxu0 0.0
    %293 = vmatprep.subr.mxu0 0.0
    %294 = vmatpush2.msra.mxu0 0.0
    %295 = vmatprep.subr.mxu0 0.0
    %296 = vmatpush2.msra.mxu0 0.0
    %297 = vmatprep.subr.mxu0 0.0
    %298 = vmatpush2.msra.mxu0 0.0
    %299 = vmatprep.subr.mxu0 0.0
    %300 = vmatpush2.msra.mxu0 0.0
    %301 = vmatprep.subr.mxu0 0.0
    %302 = vmatpush2.msra.mxu0 0.0
    %303 = vmatprep.subr.mxu0 0.0
    %304 = vmatpush2.msra.mxu0 0.0
    %305 = vmatprep.subr.mxu0 0.0
    %306 = vmatpush2.msra.mxu0 0.0
    %307 = vmatprep.subr.mxu0 0.0
    %308 = vmatpush2.msra.mxu0 0.0
    %309 = vmatprep.subr.mxu0 0.0
    %310 = vmatpush2.msra.mxu0 0.0
    %311 = vmatprep.mubr.f32.mxu0 0.0
    %312 = vmatmul.mubr.f32.gmra.mxu0 %v242
    %v313 = vpop.f32.mrf.mxu0
    %v314 = vadd.f32 %v238, %v313
    %v315 = vpop.f32.mrf.mxu0
    %316 = vmatprep.mubr.f32.mxu0 0.0
    %317 = vmatmul.mubr.f32.gmra.mxu0 %v245
    %v318 = vpop.f32.mrf.mxu0
    %v319 = vadd.f32 %v238, %v318
    %v320 = vpop.f32.mrf.mxu0
    %321 = vdwg.mxu0
    %v322 = vld [vmem:[%s7] sm:$0xff]
    %v323 = vld [vmem:[%s7 + $0x8] sm:$0xff]
    %v324 = vld [vmem:[%s7 + $0x10] sm:$0xff]
    %v325 = vld [vmem:[%s7 + $0x18] sm:$0xff]
    %v326 = vld [vmem:[#allocation6] sm:$0x3]
    %v327 = vld [vmem:[#allocation8] sm:$0x3]
    %v329 = vsel %vm240, %v326, 0
    %331 = vmatprep.subr.mxu0 0.0
    %332 = vmatpush1.msra.mxu0 0.0
    %333 = vmatprep.subr.mxu0 0.0
    %334 = vmatpush1.msra.mxu0 0.0
    %335 = vmatprep.subr.mxu0 0.0
    %336 = vmatpush1.msra.mxu0 0.0
    %337 = vmatprep.subr.mxu0 0.0
    %338 = vmatpush1.msra.mxu0 0.0
    %339 = vmatprep.subr.mxu0 0.0
    %340 = vmatpush1.msra.mxu0 0.0
    %341 = vmatprep.subr.mxu0 0.0
    %342 = vmatpush1.msra.mxu0 0.0
    %343 = vmatprep.subr.mxu0 0.0
    %344 = vmatpush1.msra.mxu0 0.0
    %345 = vmatprep.subr.mxu0 0.0
    %346 = vmatpush1.msra.mxu0 0.0
    %347 = vmatprep.subr.mxu0 0.0
    %348 = vmatpush1.msra.mxu0 0.0
    %349 = vmatprep.subr.mxu0 0.0
    %350 = vmatpush1.msra.mxu0 0.0
    %351 = vmatprep.subr.mxu0 0.0
    %352 = vmatpush1.msra.mxu0 0.0
    %353 = vmatprep.subr.mxu0 0.0
    %354 = vmatpush1.msra.mxu0 0.0
    %355 = vmatprep.subr.mxu0 0.0
    %356 = vmatpush1.msra.mxu0 %v325
    %357 = vmatprep.subr.mxu0 0.0
    %358 = vmatpush1.msra.mxu0 %v324
    %359 = vmatprep.subr.mxu0 0.0
    %360 = vmatpush1.msra.mxu0 %v323
    %361 = vmatprep.subr.mxu0 0.0
    %362 = vmatpush1.msra.mxu0 %v322
    %363 = vmatprep.subr.mxu0 0.0
    %364 = vmatpush2.msra.mxu0 0.0
    %365 = vmatprep.subr.mxu0 0.0
    %366 = vmatpush2.msra.mxu0 0.0
    %367 = vmatprep.subr.mxu0 0.0
    %368 = vmatpush2.msra.mxu0 0.0
    %369 = vmatprep.subr.mxu0 0.0
    %370 = vmatpush2.msra.mxu0 0.0
    %371 = vmatprep.subr.mxu0 0.0
    %372 = vmatpush2.msra.mxu0 0.0
    %373 = vmatprep.subr.mxu0 0.0
    %374 = vmatpush2.msra.mxu0 0.0
    %375 = vmatprep.subr.mxu0 0.0
    %376 = vmatpush2.msra.mxu0 0.0
    %377 = vmatprep.subr.mxu0 0.0
    %378 = vmatpush2.msra.mxu0 0.0
    %379 = vmatprep.subr.mxu0 0.0
    %380 = vmatpush2.msra.mxu0 0.0
    %381 = vmatprep.subr.mxu0 0.0
    %382 = vmatpush2.msra.mxu0 0.0
    %383 = vmatprep.subr.mxu0 0.0
    %384 = vmatpush2.msra.mxu0 0.0
    %385 = vmatprep.subr.mxu0 0.0
    %386 = vmatpush2.msra.mxu0 0.0
    %387 = vmatprep.subr.mxu0 0.0
    %388 = vmatpush2.msra.mxu0 0.0
    %389 = vmatprep.subr.mxu0 0.0
    %390 = vmatpush2.msra.mxu0 0.0
    %391 = vmatprep.subr.mxu0 0.0
    %392 = vmatpush2.msra.mxu0 0.0
    %393 = vmatprep.subr.mxu0 0.0
    %394 = vmatpush2.msra.mxu0 0.0
    %395 = vmatprep.mubr.f32.mxu0 0.0
    %396 = vmatmul.mubr.f32.gmra.mxu0 %v329
    %v397 = vpop.f32.mrf.mxu0
    %v398 = vadd.f32 0.0, %v397
    %v399 = vpop.f32.mrf.mxu0
    %400 = vdwg.mxu0
    %v402 = vrot.slane %v398, 1
    %v405 = vadd.f32 %v314, %v398
    %v406 = vadd.f32 %v319, %v402
    %v407 = vxor.u32 %v405, 2147483648
    %v408 = vxor.u32 %v406, 2147483648
    %v409 = vmul.f32 %v407, 1.442695
    %v410 = vpow.pop %v409
    %v411 = vmul.f32 %v408, 1.442695
    %v412 = vpow.pop %v411
    %v413 = vadd.f32 %v410, 1.0
    %v414 = vadd.f32 %v412, 1.0
    %v415 = vrcp.pop %v413
    %v416 = vmul.f32 1.0, %v415
    %v417 = vrcp.pop %v414
    %v418 = vmul.f32 1.0, %v417
    %v419 = vtanh.pop %v405
    %v420 = vtanh.pop %v406
    %v422 = vrot.slane %v327, 1
    %423 = vrot.lane.b32.xlu0 %v327, 32
    %v424 = vpop.permute.xlu0 %423
    %425 = vrot.lane.b32.xlu0 %v422, 32
    %v426 = vpop.permute.xlu0 %425
    %v429 = vmul.f32 %v416, %v424
    %v430 = vmul.f32 %v418, %v426
    %433 = vrot.lane.b32.xlu0 %v419, 64
    %v434 = vpop.permute.xlu0 %433
    %435 = vrot.lane.b32.xlu0 %v420, 64
    %v436 = vpop.permute.xlu0 %435
    %v439 = vmul.f32 %v416, %v434
    %v440 = vmul.f32 %v418, %v436
    %443 = vrot.lane.b32.xlu0 %v439, 32
    %v444 = vpop.permute.xlu0 %443
    %445 = vrot.lane.b32.xlu0 %v440, 32
    %v446 = vpop.permute.xlu0 %445
    %v449 = vadd.f32 %v429, %v444
    %v450 = vadd.f32 %v430, %v446
    %v451 = vtanh.pop %v449
    %v452 = vtanh.pop %v450
    %455 = vrot.lane.b32.xlu0 %v451, 64
    %v456 = vpop.permute.xlu0 %455
    %457 = vrot.lane.b32.xlu0 %v452, 64
    %v458 = vpop.permute.xlu0 %457
    %v461 = vmul.f32 %v416, %v456
    %v462 = vmul.f32 %v418, %v458
    %465 = vrot.lane.b32.xlu0 %v461, 32
    %v466 = vpop.permute.xlu0 %465
    %467 = vrot.lane.b32.xlu0 %v462, 32
    %v468 = vpop.permute.xlu0 %467
    %vm471 = vcmask 253952
    %472 = vst.msk [vmem:[#allocation2] sm:$0x1] %vm471, %v466
    %473 = vst.msk [vmem:[#allocation2 + $0x8] sm:$0x1] %vm471, %v468
    %v474 = vrot.slane %v462, 7
    %vm475 = vcmask 1041409
    %v476 = vsel %vm475, %v474, %v461
    %477 = vrot.lane.b32.xlu0 %v476, 32
    %v478 = vpop.permute.xlu0 %477
    %v479 = vsel %vm240, %v478, 0
    %481 = vmatprep.subr.mxu0 0.0
    %482 = vmatpush1.msra.mxu0 0.0
    %483 = vmatprep.subr.mxu0 0.0
    %484 = vmatpush1.msra.mxu0 0.0
    %485 = vmatprep.subr.mxu0 0.0
    %486 = vmatpush1.msra.mxu0 0.0
    %487 = vmatprep.subr.mxu0 0.0
    %488 = vmatpush1.msra.mxu0 0.0
    %489 = vmatprep.subr.mxu0 0.0
    %490 = vmatpush1.msra.mxu0 0.0
    %491 = vmatprep.subr.mxu0 0.0
    %492 = vmatpush1.msra.mxu0 0.0
    %493 = vmatprep.subr.mxu0 0.0
    %494 = vmatpush1.msra.mxu0 0.0
    %495 = vmatprep.subr.mxu0 0.0
    %496 = vmatpush1.msra.mxu0 0.0
    %497 = vmatprep.subr.mxu0 0.0
    %498 = vmatpush1.msra.mxu0 0.0
    %499 = vmatprep.subr.mxu0 0.0
    %500 = vmatpush1.msra.mxu0 0.0
    %501 = vmatprep.subr.mxu0 0.0
    %502 = vmatpush1.msra.mxu0 0.0
    %503 = vmatprep.subr.mxu0 0.0
    %504 = vmatpush1.msra.mxu0 0.0
    %505 = vmatprep.subr.mxu0 0.0
    %506 = vmatpush1.msra.mxu0 %v325
    %507 = vmatprep.subr.mxu0 0.0
    %508 = vmatpush1.msra.mxu0 %v324
    %509 = vmatprep.subr.mxu0 0.0
    %510 = vmatpush1.msra.mxu0 %v323
    %511 = vmatprep.subr.mxu0 0.0
    %512 = vmatpush1.msra.mxu0 %v322
    %513 = vmatprep.subr.mxu0 0.0
    %514 = vmatpush2.msra.mxu0 0.0
    %515 = vmatprep.subr.mxu0 0.0
    %516 = vmatpush2.msra.mxu0 0.0
    %517 = vmatprep.subr.mxu0 0.0
    %518 = vmatpush2.msra.mxu0 0.0
    %519 = vmatprep.subr.mxu0 0.0
    %520 = vmatpush2.msra.mxu0 0.0
    %521 = vmatprep.subr.mxu0 0.0
    %522 = vmatpush2.msra.mxu0 0.0
    %523 = vmatprep.subr.mxu0 0.0
    %524 = vmatpush2.msra.mxu0 0.0
    %525 = vmatprep.subr.mxu0 0.0
    %526 = vmatpush2.msra.mxu0 0.0
    %527 = vmatprep.subr.mxu0 0.0
    %528 = vmatpush2.msra.mxu0 0.0
    %529 = vmatprep.subr.mxu0 0.0
    %530 = vmatpush2.msra.mxu0 0.0
    %531 = vmatprep.subr.mxu0 0.0
    %532 = vmatpush2.msra.mxu0 0.0
    %533 = vmatprep.subr.mxu0 0.0
    %534 = vmatpush2.msra.mxu0 0.0
    %535 = vmatprep.subr.mxu0 0.0
    %536 = vmatpush2.msra.mxu0 0.0
    %537 = vmatprep.subr.mxu0 0.0
    %538 = vmatpush2.msra.mxu0 0.0
    %539 = vmatprep.subr.mxu0 0.0
    %540 = vmatpush2.msra.mxu0 0.0
    %541 = vmatprep.subr.mxu0 0.0
    %542 = vmatpush2.msra.mxu0 0.0
    %543 = vmatprep.subr.mxu0 0.0
    %544 = vmatpush2.msra.mxu0 0.0
    %545 = vmatprep.mubr.f32.mxu0 0.0
    %546 = vmatmul.mubr.f32.gmra.mxu0 %v479
    %v547 = vpop.f32.mrf.mxu0
    %v548 = vadd.f32 0.0, %v547
    %v549 = vpop.f32.mrf.mxu0
    %550 = vdwg.mxu0
    %v552 = vrot.slane %v548, 7
    %v555 = vadd.f32 %v314, %v552
    %v556 = vadd.f32 %v319, %v548
    %v557 = vxor.u32 %v555, 2147483648
    %v558 = vxor.u32 %v556, 2147483648
    %v559 = vmul.f32 %v557, 1.442695
    %v560 = vpow.pop %v559
    %v561 = vmul.f32 %v558, 1.442695
    %v562 = vpow.pop %v561
    %v563 = vadd.f32 %v560, 1.0
    %v564 = vadd.f32 %v562, 1.0
    %v565 = vrcp.pop %v563
    %v566 = vmul.f32 1.0, %v565
    %v567 = vrcp.pop %v564
    %v568 = vmul.f32 1.0, %v567
    %v569 = vtanh.pop %v555
    %v570 = vtanh.pop %v556
    %v573 = vrot.slane %v449, 7
    %v574 = vrot.slane %v450, 7
    %v577 = vmul.f32 %v566, %v573
    %v578 = vmul.f32 %v568, %v574
    %581 = vrot.lane.b32.xlu0 %v569, 64
    %v582 = vpop.permute.xlu0 %581
    %583 = vrot.lane.b32.xlu0 %v570, 64
    %v584 = vpop.permute.xlu0 %583
    %v587 = vmul.f32 %v566, %v582
    %v588 = vmul.f32 %v568, %v584
    %591 = vrot.lane.b32.xlu0 %v587, 32
    %v592 = vpop.permute.xlu0 %591
    %593 = vrot.lane.b32.xlu0 %v588, 32
    %v594 = vpop.permute.xlu0 %593
    %v597 = vadd.f32 %v577, %v592
    %v598 = vadd.f32 %v578, %v594
    %v599 = vtanh.pop %v597
    %v600 = vtanh.pop %v598
    %603 = vrot.lane.b32.xlu0 %v599, 64
    %v604 = vpop.permute.xlu0 %603
    %605 = vrot.lane.b32.xlu0 %v600, 64
    %v606 = vpop.permute.xlu0 %605
    %v609 = vmul.f32 %v566, %v604
    %v610 = vmul.f32 %v568, %v606
    %613 = vrot.lane.b32.xlu0 %v609, 32
    %v614 = vpop.permute.xlu0 %613
    %615 = vrot.lane.b32.xlu0 %v610, 32
    %v616 = vpop.permute.xlu0 %615
    %vm619 = vcmask 254977
    %620 = vst.msk [vmem:[#allocation2] sm:$0x2] %vm619, %v614
    %621 = vst.msk [vmem:[#allocation2 + $0x8] sm:$0x2] %vm619, %v616
    %v622 = vrot.slane %v609, 1
    %v623 = vsel %vm475, %v610, %v622
    %624 = vrot.lane.b32.xlu0 %v623, 32
    %v625 = vpop.permute.xlu0 %624
    %v626 = vsel %vm240, %v625, 0
    %628 = vmatprep.subr.mxu0 0.0
    %629 = vmatpush1.msra.mxu0 0.0
    %630 = vmatprep.subr.mxu0 0.0
    %631 = vmatpush1.msra.mxu0 0.0
    %632 = vmatprep.subr.mxu0 0.0
    %633 = vmatpush1.msra.mxu0 0.0
    %634 = vmatprep.subr.mxu0 0.0
    %635 = vmatpush1.msra.mxu0 0.0
    %636 = vmatprep.subr.mxu0 0.0
    %637 = vmatpush1.msra.mxu0 0.0
    %638 = vmatprep.subr.mxu0 0.0
    %639 = vmatpush1.msra.mxu0 0.0
    %640 = vmatprep.subr.mxu0 0.0
    %641 = vmatpush1.msra.mxu0 0.0
    %642 = vmatprep.subr.mxu0 0.0
    %643 = vmatpush1.msra.mxu0 0.0
    %644 = vmatprep.subr.mxu0 0.0
    %645 = vmatpush1.msra.mxu0 0.0
    %646 = vmatprep.subr.mxu0 0.0
    %647 = vmatpush1.msra.mxu0 0.0
    %648 = vmatprep.subr.mxu0 0.0
    %649 = vmatpush1.msra.mxu0 0.0
    %650 = vmatprep.subr.mxu0 0.0
    %651 = vmatpush1.msra.mxu0 0.0
    %652 = vmatprep.subr.mxu0 0.0
    %653 = vmatpush1.msra.mxu0 %v325
    %654 = vmatprep.subr.mxu0 0.0
    %655 = vmatpush1.msra.mxu0 %v324
    %656 = vmatprep.subr.mxu0 0.0
    %657 = vmatpush1.msra.mxu0 %v323
    %658 = vmatprep.subr.mxu0 0.0
    %659 = vmatpush1.msra.mxu0 %v322
    %660 = vmatprep.subr.mxu0 0.0
    %661 = vmatpush2.msra.mxu0 0.0
    %662 = vmatprep.subr.mxu0 0.0
    %663 = vmatpush2.msra.mxu0 0.0
    %664 = vmatprep.subr.mxu0 0.0
    %665 = vmatpush2.msra.mxu0 0.0
    %666 = vmatprep.subr.mxu0 0.0
    %667 = vmatpush2.msra.mxu0 0.0
    %668 = vmatprep.subr.mxu0 0.0
    %669 = vmatpush2.msra.mxu0 0.0
    %670 = vmatprep.subr.mxu0 0.0
    %671 = vmatpush2.msra.mxu0 0.0
    %672 = vmatprep.subr.mxu0 0.0
    %673 = vmatpush2.msra.mxu0 0.0
    %674 = vmatprep.subr.mxu0 0.0
    %675 = vmatpush2.msra.mxu0 0.0
    %676 = vmatprep.subr.mxu0 0.0
    %677 = vmatpush2.msra.mxu0 0.0
    %678 = vmatprep.subr.mxu0 0.0
    %679 = vmatpush2.msra.mxu0 0.0
    %680 = vmatprep.subr.mxu0 0.0
    %681 = vmatpush2.msra.mxu0 0.0
    %682 = vmatprep.subr.mxu0 0.0
    %683 = vmatpush2.msra.mxu0 0.0
    %684 = vmatprep.subr.mxu0 0.0
    %685 = vmatpush2.msra.mxu0 0.0
    %686 = vmatprep.subr.mxu0 0.0
    %687 = vmatpush2.msra.mxu0 0.0
    %688 = vmatprep.subr.mxu0 0.0
    %689 = vmatpush2.msra.mxu0 0.0
    %690 = vmatprep.subr.mxu0 0.0
    %691 = vmatpush2.msra.mxu0 0.0
    %692 = vmatprep.mubr.f32.mxu0 0.0
    %693 = vmatmul.mubr.f32.gmra.mxu0 %v626
    %v694 = vpop.f32.mrf.mxu0
    %v695 = vadd.f32 0.0, %v694
    %v696 = vpop.f32.mrf.mxu0
    %697 = vdwg.mxu0
    %v699 = vrot.slane %v695, 6
    %v700 = vrot.slane %v695, 7
    %v703 = vadd.f32 %v314, %v699
    %v704 = vadd.f32 %v319, %v700
    %v705 = vxor.u32 %v703, 2147483648
    %v706 = vxor.u32 %v704, 2147483648
    %v707 = vmul.f32 %v705, 1.442695
    %v708 = vpow.pop %v707
    %v709 = vmul.f32 %v706, 1.442695
    %v710 = vpow.pop %v709
    %v711 = vadd.f32 %v708, 1.0
    %v712 = vadd.f32 %v710, 1.0
    %v713 = vrcp.pop %v711
    %v714 = vmul.f32 1.0, %v713
    %v715 = vrcp.pop %v712
    %v716 = vmul.f32 1.0, %v715
    %v717 = vtanh.pop %v703
    %v718 = vtanh.pop %v704
    %v721 = vrot.slane %v597, 7
    %v722 = vrot.slane %v598, 7
    %v725 = vmul.f32 %v714, %v721
    %v726 = vmul.f32 %v716, %v722
    %729 = vrot.lane.b32.xlu0 %v717, 64
    %v730 = vpop.permute.xlu0 %729
    %731 = vrot.lane.b32.xlu0 %v718, 64
    %v732 = vpop.permute.xlu0 %731
    %v735 = vmul.f32 %v714, %v730
    %v736 = vmul.f32 %v716, %v732
    %739 = vrot.lane.b32.xlu0 %v735, 32
    %v740 = vpop.permute.xlu0 %739
    %741 = vrot.lane.b32.xlu0 %v736, 32
    %v742 = vpop.permute.xlu0 %741
    %v745 = vadd.f32 %v725, %v740
    %v746 = vadd.f32 %v726, %v742
    %v747 = vtanh.pop %v745
    %v748 = vtanh.pop %v746
    %751 = vrot.lane.b32.xlu0 %v747, 64
    %v752 = vpop.permute.xlu0 %751
    %753 = vrot.lane.b32.xlu0 %v748, 64
    %v754 = vpop.permute.xlu0 %753
    %v757 = vmul.f32 %v714, %v752
    %v758 = vmul.f32 %v716, %v754
    %761 = vrot.lane.b32.xlu0 %v757, 32
    %v762 = vpop.permute.xlu0 %761
    %763 = vrot.lane.b32.xlu0 %v758, 32
    %v764 = vpop.permute.xlu0 %763
    %vm767 = vcmask 256002
    %768 = vst.msk [vmem:[#allocation2] sm:$0x4] %vm767, %v762
    %769 = vst.msk [vmem:[#allocation2 + $0x8] sm:$0x4] %vm767, %v764
    %v770 = vrot.slane %v757, 2
    %v771 = vrot.slane %v758, 1
    %v772 = vsel %vm475, %v771, %v770
    %773 = vrot.lane.b32.xlu0 %v772, 32
    %v774 = vpop.permute.xlu0 %773
    %v775 = vsel %vm240, %v774, 0
    %777 = vmatprep.subr.mxu0 0.0
    %778 = vmatpush1.msra.mxu0 0.0
    %779 = vmatprep.subr.mxu0 0.0
    %780 = vmatpush1.msra.mxu0 0.0
    %781 = vmatprep.subr.mxu0 0.0
    %782 = vmatpush1.msra.mxu0 0.0
    %783 = vmatprep.subr.mxu0 0.0
    %784 = vmatpush1.msra.mxu0 0.0
    %785 = vmatprep.subr.mxu0 0.0
    %786 = vmatpush1.msra.mxu0 0.0
    %787 = vmatprep.subr.mxu0 0.0
    %788 = vmatpush1.msra.mxu0 0.0
    %789 = vmatprep.subr.mxu0 0.0
    %790 = vmatpush1.msra.mxu0 0.0
    %791 = vmatprep.subr.mxu0 0.0
    %792 = vmatpush1.msra.mxu0 0.0
    %793 = vmatprep.subr.mxu0 0.0
    %794 = vmatpush1.msra.mxu0 0.0
    %795 = vmatprep.subr.mxu0 0.0
    %796 = vmatpush1.msra.mxu0 0.0
    %797 = vmatprep.subr.mxu0 0.0
    %798 = vmatpush1.msra.mxu0 0.0
    %799 = vmatprep.subr.mxu0 0.0
    %800 = vmatpush1.msra.mxu0 0.0
    %801 = vmatprep.subr.mxu0 0.0
    %802 = vmatpush1.msra.mxu0 %v325
    %803 = vmatprep.subr.mxu0 0.0
    %804 = vmatpush1.msra.mxu0 %v324
    %805 = vmatprep.subr.mxu0 0.0
    %806 = vmatpush1.msra.mxu0 %v323
    %807 = vmatprep.subr.mxu0 0.0
    %808 = vmatpush1.msra.mxu0 %v322
    %809 = vmatprep.subr.mxu0 0.0
    %810 = vmatpush2.msra.mxu0 0.0
    %811 = vmatprep.subr.mxu0 0.0
    %812 = vmatpush2.msra.mxu0 0.0
    %813 = vmatprep.subr.mxu0 0.0
    %814 = vmatpush2.msra.mxu0 0.0
    %815 = vmatprep.subr.mxu0 0.0
    %816 = vmatpush2.msra.mxu0 0.0
    %817 = vmatprep.subr.mxu0 0.0
    %818 = vmatpush2.msra.mxu0 0.0
    %819 = vmatprep.subr.mxu0 0.0
    %820 = vmatpush2.msra.mxu0 0.0
    %821 = vmatprep.subr.mxu0 0.0
    %822 = vmatpush2.msra.mxu0 0.0
    %823 = vmatprep.subr.mxu0 0.0
    %824 = vmatpush2.msra.mxu0 0.0
    %825 = vmatprep.subr.mxu0 0.0
    %826 = vmatpush2.msra.mxu0 0.0
    %827 = vmatprep.subr.mxu0 0.0
    %828 = vmatpush2.msra.mxu0 0.0
    %829 = vmatprep.subr.mxu0 0.0
    %830 = vmatpush2.msra.mxu0 0.0
    %831 = vmatprep.subr.mxu0 0.0
    %832 = vmatpush2.msra.mxu0 0.0
    %833 = vmatprep.subr.mxu0 0.0
    %834 = vmatpush2.msra.mxu0 0.0
    %835 = vmatprep.subr.mxu0 0.0
    %836 = vmatpush2.msra.mxu0 0.0
    %837 = vmatprep.subr.mxu0 0.0
    %838 = vmatpush2.msra.mxu0 0.0
    %839 = vmatprep.subr.mxu0 0.0
    %840 = vmatpush2.msra.mxu0 0.0
    %841 = vmatprep.mubr.f32.mxu0 0.0
    %842 = vmatmul.mubr.f32.gmra.mxu0 %v775
    %v843 = vpop.f32.mrf.mxu0
    %v844 = vadd.f32 0.0, %v843
    %v845 = vpop.f32.mrf.mxu0
    %846 = vdwg.mxu0
    %v848 = vrot.slane %v844, 5
    %v849 = vrot.slane %v844, 6
    %v852 = vadd.f32 %v314, %v848
    %v853 = vadd.f32 %v319, %v849
    %v854 = vxor.u32 %v852, 2147483648
    %v855 = vxor.u32 %v853, 2147483648
    %v856 = vmul.f32 %v854, 1.442695
    %v857 = vpow.pop %v856
    %v858 = vmul.f32 %v855, 1.442695
    %v859 = vpow.pop %v858
    %v860 = vadd.f32 %v857, 1.0
    %v861 = vadd.f32 %v859, 1.0
    %v862 = vrcp.pop %v860
    %v863 = vmul.f32 1.0, %v862
    %v864 = vrcp.pop %v861
    %v865 = vmul.f32 1.0, %v864
    %v866 = vtanh.pop %v852
    %v867 = vtanh.pop %v853
    %v870 = vrot.slane %v745, 7
    %v871 = vrot.slane %v746, 7
    %v874 = vmul.f32 %v863, %v870
    %v875 = vmul.f32 %v865, %v871
    %878 = vrot.lane.b32.xlu0 %v866, 64
    %v879 = vpop.permute.xlu0 %878
    %880 = vrot.lane.b32.xlu0 %v867, 64
    %v881 = vpop.permute.xlu0 %880
    %v884 = vmul.f32 %v863, %v879
    %v885 = vmul.f32 %v865, %v881
    %888 = vrot.lane.b32.xlu0 %v884, 32
    %v889 = vpop.permute.xlu0 %888
    %890 = vrot.lane.b32.xlu0 %v885, 32
    %v891 = vpop.permute.xlu0 %890
    %v894 = vadd.f32 %v874, %v889
    %v895 = vadd.f32 %v875, %v891
    %v896 = vtanh.pop %v894
    %v897 = vtanh.pop %v895
    %900 = vrot.lane.b32.xlu0 %v896, 64
    %v901 = vpop.permute.xlu0 %900
    %902 = vrot.lane.b32.xlu0 %v897, 64
    %v903 = vpop.permute.xlu0 %902
    %v906 = vmul.f32 %v863, %v901
    %v907 = vmul.f32 %v865, %v903
    %910 = vrot.lane.b32.xlu0 %v906, 32
    %v911 = vpop.permute.xlu0 %910
    %912 = vrot.lane.b32.xlu0 %v907, 32
    %v913 = vpop.permute.xlu0 %912
    %vm916 = vcmask 257027
    %917 = vst.msk [vmem:[#allocation2] sm:$0x8] %vm916, %v911
    %918 = vst.msk [vmem:[#allocation2 + $0x8] sm:$0x8] %vm916, %v913
    %v919 = vrot.slane %v906, 3
    %v920 = vrot.slane %v907, 2
    %v921 = vsel %vm475, %v920, %v919
    %922 = vrot.lane.b32.xlu0 %v921, 32
    %v923 = vpop.permute.xlu0 %922
    %v924 = vsel %vm240, %v923, 0
    %926 = vmatprep.subr.mxu0 0.0
    %927 = vmatpush1.msra.mxu0 0.0
    %928 = vmatprep.subr.mxu0 0.0
    %929 = vmatpush1.msra.mxu0 0.0
    %930 = vmatprep.subr.mxu0 0.0
    %931 = vmatpush1.msra.mxu0 0.0
    %932 = vmatprep.subr.mxu0 0.0
    %933 = vmatpush1.msra.mxu0 0.0
    %934 = vmatprep.subr.mxu0 0.0
    %935 = vmatpush1.msra.mxu0 0.0
    %936 = vmatprep.subr.mxu0 0.0
    %937 = vmatpush1.msra.mxu0 0.0
    %938 = vmatprep.subr.mxu0 0.0
    %939 = vmatpush1.msra.mxu0 0.0
    %940 = vmatprep.subr.mxu0 0.0
    %941 = vmatpush1.msra.mxu0 0.0
    %942 = vmatprep.subr.mxu0 0.0
    %943 = vmatpush1.msra.mxu0 0.0
    %944 = vmatprep.subr.mxu0 0.0
    %945 = vmatpush1.msra.mxu0 0.0
    %946 = vmatprep.subr.mxu0 0.0
    %947 = vmatpush1.msra.mxu0 0.0
    %948 = vmatprep.subr.mxu0 0.0
    %949 = vmatpush1.msra.mxu0 0.0
    %950 = vmatprep.subr.mxu0 0.0
    %951 = vmatpush1.msra.mxu0 %v325
    %952 = vmatprep.subr.mxu0 0.0
    %953 = vmatpush1.msra.mxu0 %v324
    %954 = vmatprep.subr.mxu0 0.0
    %955 = vmatpush1.msra.mxu0 %v323
    %956 = vmatprep.subr.mxu0 0.0
    %957 = vmatpush1.msra.mxu0 %v322
    %958 = vmatprep.subr.mxu0 0.0
    %959 = vmatpush2.msra.mxu0 0.0
    %960 = vmatprep.subr.mxu0 0.0
    %961 = vmatpush2.msra.mxu0 0.0
    %962 = vmatprep.subr.mxu0 0.0
    %963 = vmatpush2.msra.mxu0 0.0
    %964 = vmatprep.subr.mxu0 0.0
    %965 = vmatpush2.msra.mxu0 0.0
    %966 = vmatprep.subr.mxu0 0.0
    %967 = vmatpush2.msra.mxu0 0.0
    %968 = vmatprep.subr.mxu0 0.0
    %969 = vmatpush2.msra.mxu0 0.0
    %970 = vmatprep.subr.mxu0 0.0
    %971 = vmatpush2.msra.mxu0 0.0
    %972 = vmatprep.subr.mxu0 0.0
    %973 = vmatpush2.msra.mxu0 0.0
    %974 = vmatprep.subr.mxu0 0.0
    %975 = vmatpush2.msra.mxu0 0.0
    %976 = vmatprep.subr.mxu0 0.0
    %977 = vmatpush2.msra.mxu0 0.0
    %978 = vmatprep.subr.mxu0 0.0
    %979 = vmatpush2.msra.mxu0 0.0
    %980 = vmatprep.subr.mxu0 0.0
    %981 = vmatpush2.msra.mxu0 0.0
    %982 = vmatprep.subr.mxu0 0.0
    %983 = vmatpush2.msra.mxu0 0.0
    %984 = vmatprep.subr.mxu0 0.0
    %985 = vmatpush2.msra.mxu0 0.0
    %986 = vmatprep.subr.mxu0 0.0
    %987 = vmatpush2.msra.mxu0 0.0
    %988 = vmatprep.subr.mxu0 0.0
    %989 = vmatpush2.msra.mxu0 0.0
    %990 = vmatprep.mubr.f32.mxu0 0.0
    %991 = vmatmul.mubr.f32.gmra.mxu0 %v924
    %v992 = vpop.f32.mrf.mxu0
    %v993 = vadd.f32 0.0, %v992
    %v994 = vpop.f32.mrf.mxu0
    %995 = vdwg.mxu0
    %v997 = vrot.slane %v993, 4
    %v998 = vrot.slane %v993, 5
    %v1001 = vadd.f32 %v314, %v997
    %v1002 = vadd.f32 %v319, %v998
    %v1003 = vxor.u32 %v1001, 2147483648
    %v1004 = vxor.u32 %v1002, 2147483648
    %v1005 = vmul.f32 %v1003, 1.442695
    %v1006 = vpow.pop %v1005
    %v1007 = vmul.f32 %v1004, 1.442695
    %v1008 = vpow.pop %v1007
    %v1009 = vadd.f32 %v1006, 1.0
    %v1010 = vadd.f32 %v1008, 1.0
    %v1011 = vrcp.pop %v1009
    %v1012 = vmul.f32 1.0, %v1011
    %v1013 = vrcp.pop %v1010
    %v1014 = vmul.f32 1.0, %v1013
    %v1015 = vtanh.pop %v1001
    %v1016 = vtanh.pop %v1002
    %v1019 = vrot.slane %v894, 7
    %v1020 = vrot.slane %v895, 7
    %v1023 = vmul.f32 %v1012, %v1019
    %v1024 = vmul.f32 %v1014, %v1020
    %1027 = vrot.lane.b32.xlu0 %v1015, 64
    %v1028 = vpop.permute.xlu0 %1027
    %1029 = vrot.lane.b32.xlu0 %v1016, 64
    %v1030 = vpop.permute.xlu0 %1029
    %v1033 = vmul.f32 %v1012, %v1028
    %v1034 = vmul.f32 %v1014, %v1030
    %1037 = vrot.lane.b32.xlu0 %v1033, 32
    %v1038 = vpop.permute.xlu0 %1037
    %1039 = vrot.lane.b32.xlu0 %v1034, 32
    %v1040 = vpop.permute.xlu0 %1039
    %v1043 = vadd.f32 %v1023, %v1038
    %v1044 = vadd.f32 %v1024, %v1040
    %v1045 = vtanh.pop %v1043
    %v1046 = vtanh.pop %v1044
    %1049 = vrot.lane.b32.xlu0 %v1045, 64
    %v1050 = vpop.permute.xlu0 %1049
    %1051 = vrot.lane.b32.xlu0 %v1046, 64
    %v1052 = vpop.permute.xlu0 %1051
    %v1055 = vmul.f32 %v1012, %v1050
    %v1056 = vmul.f32 %v1014, %v1052
    %1059 = vrot.lane.b32.xlu0 %v1055, 32
    %v1060 = vpop.permute.xlu0 %1059
    %1061 = vrot.lane.b32.xlu0 %v1056, 32
    %v1062 = vpop.permute.xlu0 %1061
    %vm1065 = vcmask 258052
    %1066 = vst.msk [vmem:[#allocation2] sm:$0x10] %vm1065, %v1060
    %1067 = vst.msk [vmem:[#allocation2 + $0x8] sm:$0x10] %vm1065, %v1062
    %v1068 = vrot.slane %v1055, 4
    %v1069 = vrot.slane %v1056, 3
    %v1070 = vsel %vm475, %v1069, %v1068
    %1071 = vrot.lane.b32.xlu0 %v1070, 32
    %v1072 = vpop.permute.xlu0 %1071
    %v1073 = vsel %vm240, %v1072, 0
    %1075 = vmatprep.subr.mxu0 0.0
    %1076 = vmatpush1.msra.mxu0 0.0
    %1077 = vmatprep.subr.mxu0 0.0
    %1078 = vmatpush1.msra.mxu0 0.0
    %1079 = vmatprep.subr.mxu0 0.0
    %1080 = vmatpush1.msra.mxu0 0.0
    %1081 = vmatprep.subr.mxu0 0.0
    %1082 = vmatpush1.msra.mxu0 0.0
    %1083 = vmatprep.subr.mxu0 0.0
    %1084 = vmatpush1.msra.mxu0 0.0
    %1085 = vmatprep.subr.mxu0 0.0
    %1086 = vmatpush1.msra.mxu0 0.0
    %1087 = vmatprep.subr.mxu0 0.0
    %1088 = vmatpush1.msra.mxu0 0.0
    %1089 = vmatprep.subr.mxu0 0.0
    %1090 = vmatpush1.msra.mxu0 0.0
    %1091 = vmatprep.subr.mxu0 0.0
    %1092 = vmatpush1.msra.mxu0 0.0
    %1093 = vmatprep.subr.mxu0 0.0
    %1094 = vmatpush1.msra.mxu0 0.0
    %1095 = vmatprep.subr.mxu0 0.0
    %1096 = vmatpush1.msra.mxu0 0.0
    %1097 = vmatprep.subr.mxu0 0.0
    %1098 = vmatpush1.msra.mxu0 0.0
    %1099 = vmatprep.subr.mxu0 0.0
    %1100 = vmatpush1.msra.mxu0 %v325
    %1101 = vmatprep.subr.mxu0 0.0
    %1102 = vmatpush1.msra.mxu0 %v324
    %1103 = vmatprep.subr.mxu0 0.0
    %1104 = vmatpush1.msra.mxu0 %v323
    %1105 = vmatprep.subr.mxu0 0.0
    %1106 = vmatpush1.msra.mxu0 %v322
    %1107 = vmatprep.subr.mxu0 0.0
    %1108 = vmatpush2.msra.mxu0 0.0
    %1109 = vmatprep.subr.mxu0 0.0
    %1110 = vmatpush2.msra.mxu0 0.0
    %1111 = vmatprep.subr.mxu0 0.0
    %1112 = vmatpush2.msra.mxu0 0.0
    %1113 = vmatprep.subr.mxu0 0.0
    %1114 = vmatpush2.msra.mxu0 0.0
    %1115 = vmatprep.subr.mxu0 0.0
    %1116 = vmatpush2.msra.mxu0 0.0
    %1117 = vmatprep.subr.mxu0 0.0
    %1118 = vmatpush2.msra.mxu0 0.0
    %1119 = vmatprep.subr.mxu0 0.0
    %1120 = vmatpush2.msra.mxu0 0.0
    %1121 = vmatprep.subr.mxu0 0.0
    %1122 = vmatpush2.msra.mxu0 0.0
    %1123 = vmatprep.subr.mxu0 0.0
    %1124 = vmatpush2.msra.mxu0 0.0
    %1125 = vmatprep.subr.mxu0 0.0
    %1126 = vmatpush2.msra.mxu0 0.0
    %1127 = vmatprep.subr.mxu0 0.0
    %1128 = vmatpush2.msra.mxu0 0.0
    %1129 = vmatprep.subr.mxu0 0.0
    %1130 = vmatpush2.msra.mxu0 0.0
    %1131 = vmatprep.subr.mxu0 0.0
    %1132 = vmatpush2.msra.mxu0 0.0
    %1133 = vmatprep.subr.mxu0 0.0
    %1134 = vmatpush2.msra.mxu0 0.0
    %1135 = vmatprep.subr.mxu0 0.0
    %1136 = vmatpush2.msra.mxu0 0.0
    %1137 = vmatprep.subr.mxu0 0.0
    %1138 = vmatpush2.msra.mxu0 0.0
    %1139 = vmatprep.mubr.f32.mxu0 0.0
    %1140 = vmatmul.mubr.f32.gmra.mxu0 %v1073
    %v1141 = vpop.f32.mrf.mxu0
    %v1142 = vadd.f32 0.0, %v1141
    %v1143 = vpop.f32.mrf.mxu0
    %1144 = vdwg.mxu0
    %v1146 = vrot.slane %v1142, 3
    %v1147 = vrot.slane %v1142, 4
    %v1150 = vadd.f32 %v314, %v1146
    %v1151 = vadd.f32 %v319, %v1147
    %v1152 = vxor.u32 %v1150, 2147483648
    %v1153 = vxor.u32 %v1151, 2147483648
    %v1154 = vmul.f32 %v1152, 1.442695
    %v1155 = vpow.pop %v1154
    %v1156 = vmul.f32 %v1153, 1.442695
    %v1157 = vpow.pop %v1156
    %v1158 = vadd.f32 %v1155, 1.0
    %v1159 = vadd.f32 %v1157, 1.0
    %v1160 = vrcp.pop %v1158
    %v1161 = vmul.f32 1.0, %v1160
    %v1162 = vrcp.pop %v1159
    %v1163 = vmul.f32 1.0, %v1162
    %v1164 = vtanh.pop %v1150
    %v1165 = vtanh.pop %v1151
    %v1168 = vrot.slane %v1043, 7
    %v1169 = vrot.slane %v1044, 7
    %v1172 = vmul.f32 %v1161, %v1168
    %v1173 = vmul.f32 %v1163, %v1169
    %1176 = vrot.lane.b32.xlu0 %v1164, 64
    %v1177 = vpop.permute.xlu0 %1176
    %1178 = vrot.lane.b32.xlu0 %v1165, 64
    %v1179 = vpop.permute.xlu0 %1178
    %v1182 = vmul.f32 %v1161, %v1177
    %v1183 = vmul.f32 %v1163, %v1179
    %1186 = vrot.lane.b32.xlu0 %v1182, 32
    %v1187 = vpop.permute.xlu0 %1186
    %1188 = vrot.lane.b32.xlu0 %v1183, 32
    %v1189 = vpop.permute.xlu0 %1188
    %v1192 = vadd.f32 %v1172, %v1187
    %v1193 = vadd.f32 %v1173, %v1189
    %v1194 = vtanh.pop %v1192
    %v1195 = vtanh.pop %v1193
    %1198 = vrot.lane.b32.xlu0 %v1194, 64
    %v1199 = vpop.permute.xlu0 %1198
    %1200 = vrot.lane.b32.xlu0 %v1195, 64
    %v1201 = vpop.permute.xlu0 %1200
    %v1204 = vmul.f32 %v1161, %v1199
    %v1205 = vmul.f32 %v1163, %v1201
    %1208 = vrot.lane.b32.xlu0 %v1204, 32
    %v1209 = vpop.permute.xlu0 %1208
    %1210 = vrot.lane.b32.xlu0 %v1205, 32
    %v1211 = vpop.permute.xlu0 %1210
    %vm1214 = vcmask 259077
    %1215 = vst.msk [vmem:[#allocation2] sm:$0x20] %vm1214, %v1209
    %1216 = vst.msk [vmem:[#allocation2 + $0x8] sm:$0x20] %vm1214, %v1211
    %v1217 = vrot.slane %v1204, 5
    %v1218 = vrot.slane %v1205, 4
    %v1219 = vsel %vm475, %v1218, %v1217
    %1220 = vrot.lane.b32.xlu0 %v1219, 32
    %v1221 = vpop.permute.xlu0 %1220
    %v1222 = vsel %vm240, %v1221, 0
    %1224 = vmatprep.subr.mxu0 0.0
    %1225 = vmatpush1.msra.mxu0 0.0
    %1226 = vmatprep.subr.mxu0 0.0
    %1227 = vmatpush1.msra.mxu0 0.0
    %1228 = vmatprep.subr.mxu0 0.0
    %1229 = vmatpush1.msra.mxu0 0.0
    %1230 = vmatprep.subr.mxu0 0.0
    %1231 = vmatpush1.msra.mxu0 0.0
    %1232 = vmatprep.subr.mxu0 0.0
    %1233 = vmatpush1.msra.mxu0 0.0
    %1234 = vmatprep.subr.mxu0 0.0
    %1235 = vmatpush1.msra.mxu0 0.0
    %1236 = vmatprep.subr.mxu0 0.0
    %1237 = vmatpush1.msra.mxu0 0.0
    %1238 = vmatprep.subr.mxu0 0.0
    %1239 = vmatpush1.msra.mxu0 0.0
    %1240 = vmatprep.subr.mxu0 0.0
    %1241 = vmatpush1.msra.mxu0 0.0
    %1242 = vmatprep.subr.mxu0 0.0
    %1243 = vmatpush1.msra.mxu0 0.0
    %1244 = vmatprep.subr.mxu0 0.0
    %1245 = vmatpush1.msra.mxu0 0.0
    %1246 = vmatprep.subr.mxu0 0.0
    %1247 = vmatpush1.msra.mxu0 0.0
    %1248 = vmatprep.subr.mxu0 0.0
    %1249 = vmatpush1.msra.mxu0 %v325
    %1250 = vmatprep.subr.mxu0 0.0
    %1251 = vmatpush1.msra.mxu0 %v324
    %1252 = vmatprep.subr.mxu0 0.0
    %1253 = vmatpush1.msra.mxu0 %v323
    %1254 = vmatprep.subr.mxu0 0.0
    %1255 = vmatpush1.msra.mxu0 %v322
    %1256 = vmatprep.subr.mxu0 0.0
    %1257 = vmatpush2.msra.mxu0 0.0
    %1258 = vmatprep.subr.mxu0 0.0
    %1259 = vmatpush2.msra.mxu0 0.0
    %1260 = vmatprep.subr.mxu0 0.0
    %1261 = vmatpush2.msra.mxu0 0.0
    %1262 = vmatprep.subr.mxu0 0.0
    %1263 = vmatpush2.msra.mxu0 0.0
    %1264 = vmatprep.subr.mxu0 0.0
    %1265 = vmatpush2.msra.mxu0 0.0
    %1266 = vmatprep.subr.mxu0 0.0
    %1267 = vmatpush2.msra.mxu0 0.0
    %1268 = vmatprep.subr.mxu0 0.0
    %1269 = vmatpush2.msra.mxu0 0.0
    %1270 = vmatprep.subr.mxu0 0.0
    %1271 = vmatpush2.msra.mxu0 0.0
    %1272 = vmatprep.subr.mxu0 0.0
    %1273 = vmatpush2.msra.mxu0 0.0
    %1274 = vmatprep.subr.mxu0 0.0
    %1275 = vmatpush2.msra.mxu0 0.0
    %1276 = vmatprep.subr.mxu0 0.0
    %1277 = vmatpush2.msra.mxu0 0.0
    %1278 = vmatprep.subr.mxu0 0.0
    %1279 = vmatpush2.msra.mxu0 0.0
    %1280 = vmatprep.subr.mxu0 0.0
    %1281 = vmatpush2.msra.mxu0 0.0
    %1282 = vmatprep.subr.mxu0 0.0
    %1283 = vmatpush2.msra.mxu0 0.0
    %1284 = vmatprep.subr.mxu0 0.0
    %1285 = vmatpush2.msra.mxu0 0.0
    %1286 = vmatprep.subr.mxu0 0.0
    %1287 = vmatpush2.msra.mxu0 0.0
    %1288 = vmatprep.mubr.f32.mxu0 0.0
    %1289 = vmatmul.mubr.f32.gmra.mxu0 %v1222
    %v1290 = vpop.f32.mrf.mxu0
    %v1291 = vadd.f32 0.0, %v1290
    %v1292 = vpop.f32.mrf.mxu0
    %1293 = vdwg.mxu0
    %v1295 = vrot.slane %v1291, 2
    %v1296 = vrot.slane %v1291, 3
    %v1299 = vadd.f32 %v314, %v1295
    %v1300 = vadd.f32 %v319, %v1296
    %v1301 = vxor.u32 %v1299, 2147483648
    %v1302 = vxor.u32 %v1300, 2147483648
    %v1303 = vmul.f32 %v1301, 1.442695
    %v1304 = vpow.pop %v1303
    %v1305 = vmul.f32 %v1302, 1.442695
    %v1306 = vpow.pop %v1305
    %v1307 = vadd.f32 %v1304, 1.0
    %v1308 = vadd.f32 %v1306, 1.0
    %v1309 = vrcp.pop %v1307
    %v1310 = vmul.f32 1.0, %v1309
    %v1311 = vrcp.pop %v1308
    %v1312 = vmul.f32 1.0, %v1311
    %v1313 = vtanh.pop %v1299
    %v1314 = vtanh.pop %v1300
    %v1317 = vrot.slane %v1192, 7
    %v1318 = vrot.slane %v1193, 7
    %v1321 = vmul.f32 %v1310, %v1317
    %v1322 = vmul.f32 %v1312, %v1318
    %1325 = vrot.lane.b32.xlu0 %v1313, 64
    %v1326 = vpop.permute.xlu0 %1325
    %1327 = vrot.lane.b32.xlu0 %v1314, 64
    %v1328 = vpop.permute.xlu0 %1327
    %v1331 = vmul.f32 %v1310, %v1326
    %v1332 = vmul.f32 %v1312, %v1328
    %1335 = vrot.lane.b32.xlu0 %v1331, 32
    %v1336 = vpop.permute.xlu0 %1335
    %1337 = vrot.lane.b32.xlu0 %v1332, 32
    %v1338 = vpop.permute.xlu0 %1337
    %v1341 = vadd.f32 %v1321, %v1336
    %v1342 = vadd.f32 %v1322, %v1338
    %v1343 = vtanh.pop %v1341
    %v1344 = vtanh.pop %v1342
    %1347 = vrot.lane.b32.xlu0 %v1343, 64
    %v1348 = vpop.permute.xlu0 %1347
    %1349 = vrot.lane.b32.xlu0 %v1344, 64
    %v1350 = vpop.permute.xlu0 %1349
    %v1353 = vmul.f32 %v1310, %v1348
    %v1354 = vmul.f32 %v1312, %v1350
    %1357 = vrot.lane.b32.xlu0 %v1353, 32
    %v1358 = vpop.permute.xlu0 %1357
    %1359 = vrot.lane.b32.xlu0 %v1354, 32
    %v1360 = vpop.permute.xlu0 %1359
    %vm1363 = vcmask 260102
    %1364 = vst.msk [vmem:[#allocation2] sm:$0x40] %vm1363, %v1358
    %1365 = vst.msk [vmem:[#allocation2 + $0x8] sm:$0x40] %vm1363, %v1360
    %v1366 = vrot.slane %v1353, 6
    %v1367 = vrot.slane %v1354, 5
    %v1368 = vsel %vm475, %v1367, %v1366
    %1369 = vrot.lane.b32.xlu0 %v1368, 32
    %v1370 = vpop.permute.xlu0 %1369
    %v1371 = vsel %vm240, %v1370, 0
    %1373 = vmatprep.subr.mxu0 0.0
    %1374 = vmatpush1.msra.mxu0 0.0
    %1375 = vmatprep.subr.mxu0 0.0
    %1376 = vmatpush1.msra.mxu0 0.0
    %1377 = vmatprep.subr.mxu0 0.0
    %1378 = vmatpush1.msra.mxu0 0.0
    %1379 = vmatprep.subr.mxu0 0.0
    %1380 = vmatpush1.msra.mxu0 0.0
    %1381 = vmatprep.subr.mxu0 0.0
    %1382 = vmatpush1.msra.mxu0 0.0
    %1383 = vmatprep.subr.mxu0 0.0
    %1384 = vmatpush1.msra.mxu0 0.0
    %1385 = vmatprep.subr.mxu0 0.0
    %1386 = vmatpush1.msra.mxu0 0.0
    %1387 = vmatprep.subr.mxu0 0.0
    %1388 = vmatpush1.msra.mxu0 0.0
    %1389 = vmatprep.subr.mxu0 0.0
    %1390 = vmatpush1.msra.mxu0 0.0
    %1391 = vmatprep.subr.mxu0 0.0
    %1392 = vmatpush1.msra.mxu0 0.0
    %1393 = vmatprep.subr.mxu0 0.0
    %1394 = vmatpush1.msra.mxu0 0.0
    %1395 = vmatprep.subr.mxu0 0.0
    %1396 = vmatpush1.msra.mxu0 0.0
    %1397 = vmatprep.subr.mxu0 0.0
    %1398 = vmatpush1.msra.mxu0 %v325
    %1399 = vmatprep.subr.mxu0 0.0
    %1400 = vmatpush1.msra.mxu0 %v324
    %1401 = vmatprep.subr.mxu0 0.0
    %1402 = vmatpush1.msra.mxu0 %v323
    %1403 = vmatprep.subr.mxu0 0.0
    %1404 = vmatpush1.msra.mxu0 %v322
    %1405 = vmatprep.subr.mxu0 0.0
    %1406 = vmatpush2.msra.mxu0 0.0
    %1407 = vmatprep.subr.mxu0 0.0
    %1408 = vmatpush2.msra.mxu0 0.0
    %1409 = vmatprep.subr.mxu0 0.0
    %1410 = vmatpush2.msra.mxu0 0.0
    %1411 = vmatprep.subr.mxu0 0.0
    %1412 = vmatpush2.msra.mxu0 0.0
    %1413 = vmatprep.subr.mxu0 0.0
    %1414 = vmatpush2.msra.mxu0 0.0
    %1415 = vmatprep.subr.mxu0 0.0
    %1416 = vmatpush2.msra.mxu0 0.0
    %1417 = vmatprep.subr.mxu0 0.0
    %1418 = vmatpush2.msra.mxu0 0.0
    %1419 = vmatprep.subr.mxu0 0.0
    %1420 = vmatpush2.msra.mxu0 0.0
    %1421 = vmatprep.subr.mxu0 0.0
    %1422 = vmatpush2.msra.mxu0 0.0
    %1423 = vmatprep.subr.mxu0 0.0
    %1424 = vmatpush2.msra.mxu0 0.0
    %1425 = vmatprep.subr.mxu0 0.0
    %1426 = vmatpush2.msra.mxu0 0.0
    %1427 = vmatprep.subr.mxu0 0.0
    %1428 = vmatpush2.msra.mxu0 0.0
    %1429 = vmatprep.subr.mxu0 0.0
    %1430 = vmatpush2.msra.mxu0 0.0
    %1431 = vmatprep.subr.mxu0 0.0
    %1432 = vmatpush2.msra.mxu0 0.0
    %1433 = vmatprep.subr.mxu0 0.0
    %1434 = vmatpush2.msra.mxu0 0.0
    %1435 = vmatprep.subr.mxu0 0.0
    %1436 = vmatpush2.msra.mxu0 0.0
    %1437 = vmatprep.mubr.f32.mxu0 0.0
    %1438 = vmatmul.mubr.f32.gmra.mxu0 %v1371
    %v1439 = vpop.f32.mrf.mxu0
    %v1440 = vadd.f32 0.0, %v1439
    %v1441 = vpop.f32.mrf.mxu0
    %1442 = vdwg.mxu0
    %v1444 = vrot.slane %v1440, 1
    %v1445 = vrot.slane %v1440, 2
    %v1448 = vadd.f32 %v314, %v1444
    %v1449 = vadd.f32 %v319, %v1445
    %v1450 = vxor.u32 %v1448, 2147483648
    %v1451 = vxor.u32 %v1449, 2147483648
    %v1452 = vmul.f32 %v1450, 1.442695
    %v1453 = vpow.pop %v1452
    %v1454 = vmul.f32 %v1451, 1.442695
    %v1455 = vpow.pop %v1454
    %v1456 = vadd.f32 %v1453, 1.0
    %v1457 = vadd.f32 %v1455, 1.0
    %v1458 = vrcp.pop %v1456
    %v1459 = vmul.f32 1.0, %v1458
    %v1460 = vrcp.pop %v1457
    %v1461 = vmul.f32 1.0, %v1460
    %v1462 = vtanh.pop %v1448
    %v1463 = vtanh.pop %v1449
    %v1466 = vrot.slane %v1341, 7
    %v1467 = vrot.slane %v1342, 7
    %v1470 = vmul.f32 %v1459, %v1466
    %v1471 = vmul.f32 %v1461, %v1467
    %1474 = vrot.lane.b32.xlu0 %v1462, 64
    %v1475 = vpop.permute.xlu0 %1474
    %1476 = vrot.lane.b32.xlu0 %v1463, 64
    %v1477 = vpop.permute.xlu0 %1476
    %v1480 = vmul.f32 %v1459, %v1475
    %v1481 = vmul.f32 %v1461, %v1477
    %1484 = vrot.lane.b32.xlu0 %v1480, 32
    %v1485 = vpop.permute.xlu0 %1484
    %1486 = vrot.lane.b32.xlu0 %v1481, 32
    %v1487 = vpop.permute.xlu0 %1486
    %v1490 = vadd.f32 %v1470, %v1485
    %v1491 = vadd.f32 %v1471, %v1487
    %v1492 = vtanh.pop %v1490
    %v1493 = vtanh.pop %v1491
    %1496 = vrot.lane.b32.xlu0 %v1492, 64
    %v1497 = vpop.permute.xlu0 %1496
    %1498 = vrot.lane.b32.xlu0 %v1493, 64
    %v1499 = vpop.permute.xlu0 %1498
    %v1502 = vmul.f32 %v1459, %v1497
    %v1503 = vmul.f32 %v1461, %v1499
    %1506 = vrot.lane.b32.xlu0 %v1502, 32
    %v1507 = vpop.permute.xlu0 %1506
    %1508 = vrot.lane.b32.xlu0 %v1503, 32
    %v1509 = vpop.permute.xlu0 %1508
    %vm1512 = vcmask 261127
    %1513 = vst.msk [vmem:[#allocation2] sm:$0x80] %vm1512, %v1507
    %1514 = vst.msk [vmem:[#allocation2 + $0x8] sm:$0x80] %vm1512, %v1509
    %v1515 = vrot.slane %v1503, 7
    %1516 = vrot.lane.b32.xlu0 %v1515, 32
    %v1517 = vpop.permute.xlu0 %1516
    %1519 = vst.msk [vmem:[#allocation15 - $0x7] sm:$0x80] %vm1512, %v1507
    %1520 = vst.msk [vmem:[#allocation15 + $0x1] sm:$0x1] %vm471, %v1517
    %v1523 = vrot.slane %v1491, 7
    %1524 = vrot.lane.b32.xlu0 %v1490, 96
    %v1525 = vpop.permute.xlu0 %1524
    %1526 = vrot.lane.b32.xlu0 %v1523, 96
    %v1527 = vpop.permute.xlu0 %1526
    %1530 = vst.msk [vmem:[#allocation17 - $0x7] sm:$0x80] %vm1512, %v1525
    %1531 = vst.msk [vmem:[#allocation17 + $0x1] sm:$0x1] %vm471, %v1527
    %v1532 = vld [vmem:[#allocation2] sm:$0xff]
    %v1533 = vld [vmem:[#allocation2 + $0x8] sm:$0xff]
    %vm1534 = vcmp.ge.f32.partialorder %v1532, 0.0
    %vm1535 = vcmp.ge.f32.partialorder %v1533, 0.0
    %v1536 = vmul.f32 %v1532, 0.01
    %v1537 = vmul.f32 %v1533, 0.01
    %v1538 = vsel %vm1534, %v1532, %v1536
    %v1539 = vsel %vm1535, %v1533, %v1537
    %v1540 = vld [vmem:[#allocation12] sm:$0xff]
    %v1541 = vld [vmem:[#allocation12 + $0x8] sm:$0xff]
    %v1542 = vld [vmem:[#allocation12 + $0x10] sm:$0xff]
    %v1543 = vld [vmem:[#allocation12 + $0x18] sm:$0xff]
    %v1544 = vld [vmem:[%s10] sm:$0x1]
    %v1546 = vlaneseq
    %v1547 = vshrl.u32 %v1546, 7
    %v1548 = vsub.s32 0, %v1547
    %v1549 = vrot.slane %v1544, %v1548
    %v1552 = vsel %vm240, %v1538, 0
    %v1555 = vsel %vm240, %v1539, 0
    %1557 = vmatprep.subr.mxu0 0.0
    %1558 = vmatpush1.msra.mxu0 0.0
    %1559 = vmatprep.subr.mxu0 0.0
    %1560 = vmatpush1.msra.mxu0 0.0
    %1561 = vmatprep.subr.mxu0 0.0
    %1562 = vmatpush1.msra.mxu0 0.0
    %1563 = vmatprep.subr.mxu0 0.0
    %1564 = vmatpush1.msra.mxu0 0.0
    %1565 = vmatprep.subr.mxu0 0.0
    %1566 = vmatpush1.msra.mxu0 0.0
    %1567 = vmatprep.subr.mxu0 0.0
    %1568 = vmatpush1.msra.mxu0 0.0
    %1569 = vmatprep.subr.mxu0 0.0
    %1570 = vmatpush1.msra.mxu0 0.0
    %1571 = vmatprep.subr.mxu0 0.0
    %1572 = vmatpush1.msra.mxu0 0.0
    %1573 = vmatprep.subr.mxu0 0.0
    %1574 = vmatpush1.msra.mxu0 0.0
    %1575 = vmatprep.subr.mxu0 0.0
    %1576 = vmatpush1.msra.mxu0 0.0
    %1577 = vmatprep.subr.mxu0 0.0
    %1578 = vmatpush1.msra.mxu0 0.0
    %1579 = vmatprep.subr.mxu0 0.0
    %1580 = vmatpush1.msra.mxu0 0.0
    %1581 = vmatprep.subr.mxu0 0.0
    %1582 = vmatpush1.msra.mxu0 %v1543
    %1583 = vmatprep.subr.mxu0 0.0
    %1584 = vmatpush1.msra.mxu0 %v1542
    %1585 = vmatprep.subr.mxu0 0.0
    %1586 = vmatpush1.msra.mxu0 %v1541
    %1587 = vmatprep.subr.mxu0 0.0
    %1588 = vmatpush1.msra.mxu0 %v1540
    %1589 = vmatprep.subr.mxu0 0.0
    %1590 = vmatpush2.msra.mxu0 0.0
    %1591 = vmatprep.subr.mxu0 0.0
    %1592 = vmatpush2.msra.mxu0 0.0
    %1593 = vmatprep.subr.mxu0 0.0
    %1594 = vmatpush2.msra.mxu0 0.0
    %1595 = vmatprep.subr.mxu0 0.0
    %1596 = vmatpush2.msra.mxu0 0.0
    %1597 = vmatprep.subr.mxu0 0.0
    %1598 = vmatpush2.msra.mxu0 0.0
    %1599 = vmatprep.subr.mxu0 0.0
    %1600 = vmatpush2.msra.mxu0 0.0
    %1601 = vmatprep.subr.mxu0 0.0
    %1602 = vmatpush2.msra.mxu0 0.0
    %1603 = vmatprep.subr.mxu0 0.0
    %1604 = vmatpush2.msra.mxu0 0.0
    %1605 = vmatprep.subr.mxu0 0.0
    %1606 = vmatpush2.msra.mxu0 0.0
    %1607 = vmatprep.subr.mxu0 0.0
    %1608 = vmatpush2.msra.mxu0 0.0
    %1609 = vmatprep.subr.mxu0 0.0
    %1610 = vmatpush2.msra.mxu0 0.0
    %1611 = vmatprep.subr.mxu0 0.0
    %1612 = vmatpush2.msra.mxu0 0.0
    %1613 = vmatprep.subr.mxu0 0.0
    %1614 = vmatpush2.msra.mxu0 0.0
    %1615 = vmatprep.subr.mxu0 0.0
    %1616 = vmatpush2.msra.mxu0 0.0
    %1617 = vmatprep.subr.mxu0 0.0
    %1618 = vmatpush2.msra.mxu0 0.0
    %1619 = vmatprep.subr.mxu0 0.0
    %1620 = vmatpush2.msra.mxu0 0.0
    %1621 = vmatprep.mubr.f32.mxu0 0.0
    %1622 = vmatmul.mubr.f32.gmra.mxu0 %v1552
    %v1623 = vpop.f32.mrf.mxu0
    %v1624 = vadd.f32 %v1549, %v1623
    %v1625 = vpop.f32.mrf.mxu0
    %1626 = vmatprep.mubr.f32.mxu0 0.0
    %1627 = vmatmul.mubr.f32.gmra.mxu0 %v1555
    %v1628 = vpop.f32.mrf.mxu0
    %v1629 = vadd.f32 %v1549, %v1628
    %v1630 = vpop.f32.mrf.mxu0
    %1631 = vdwg.mxu0
    %vm1632 = vcmp.ge.f32.partialorder %v1624, 0.0
    %vm1633 = vcmp.ge.f32.partialorder %v1629, 0.0
    %v1634 = vmul.f32 %v1624, 0.01
    %v1635 = vmul.f32 %v1629, 0.01
    %v1636 = vsel %vm1632, %v1624, %v1634
    %v1637 = vsel %vm1633, %v1629, %v1635
    %v1638 = vld [vmem:[%s11] sm:$0xff]
    %v1639 = vld [vmem:[%s11 + $0x8] sm:$0xff]
    %v1640 = vld [vmem:[%s11 + $0x10] sm:$0xff]
    %v1641 = vld [vmem:[%s11 + $0x18] sm:$0xff]
    %v1642 = vld [vmem:[%s12] sm:$0xf]
    %vm1643 = vcmask 31744
    %v1645 = vsel %vm1643, %v130, 0
    %v1648 = vsel %vm1643, %v131, 0
    %vm1650 = vcmask 1043456
    %v1652 = vsel %vm1650, %v1642, 0
    %1654 = vmatprep.subr.mxu0 0.0
    %1655 = vmatpush1.msra.mxu0 0.0
    %1656 = vmatprep.subr.mxu0 0.0
    %1657 = vmatpush1.msra.mxu0 0.0
    %1658 = vmatprep.subr.mxu0 0.0
    %1659 = vmatpush1.msra.mxu0 0.0
    %1660 = vmatprep.subr.mxu0 0.0
    %1661 = vmatpush1.msra.mxu0 0.0
    %1662 = vmatprep.subr.mxu0 0.0
    %1663 = vmatpush1.msra.mxu0 0.0
    %1664 = vmatprep.subr.mxu0 0.0
    %1665 = vmatpush1.msra.mxu0 0.0
    %1666 = vmatprep.subr.mxu0 0.0
    %1667 = vmatpush1.msra.mxu0 0.0
    %1668 = vmatprep.subr.mxu0 0.0
    %1669 = vmatpush1.msra.mxu0 0.0
    %1670 = vmatprep.subr.mxu0 0.0
    %1671 = vmatpush1.msra.mxu0 0.0
    %1672 = vmatprep.subr.mxu0 0.0
    %1673 = vmatpush1.msra.mxu0 0.0
    %1674 = vmatprep.subr.mxu0 0.0
    %1675 = vmatpush1.msra.mxu0 0.0
    %1676 = vmatprep.subr.mxu0 0.0
    %1677 = vmatpush1.msra.mxu0 0.0
    %1678 = vmatprep.subr.mxu0 0.0
    %1679 = vmatpush1.msra.mxu0 0.0
    %1680 = vmatprep.subr.mxu0 0.0
    %1681 = vmatpush1.msra.mxu0 0.0
    %1682 = vmatprep.subr.mxu0 0.0
    %1683 = vmatpush1.msra.mxu0 0.0
    %1684 = vmatprep.subr.mxu0 0.0
    %1685 = vmatpush1.msra.mxu0 %v1652
    %1686 = vmatprep.subr.mxu0 0.0
    %1687 = vmatpush2.msra.mxu0 0.0
    %1688 = vmatprep.subr.mxu0 0.0
    %1689 = vmatpush2.msra.mxu0 0.0
    %1690 = vmatprep.subr.mxu0 0.0
    %1691 = vmatpush2.msra.mxu0 0.0
    %1692 = vmatprep.subr.mxu0 0.0
    %1693 = vmatpush2.msra.mxu0 0.0
    %1694 = vmatprep.subr.mxu0 0.0
    %1695 = vmatpush2.msra.mxu0 0.0
    %1696 = vmatprep.subr.mxu0 0.0
    %1697 = vmatpush2.msra.mxu0 0.0
    %1698 = vmatprep.subr.mxu0 0.0
    %1699 = vmatpush2.msra.mxu0 0.0
    %1700 = vmatprep.subr.mxu0 0.0
    %1701 = vmatpush2.msra.mxu0 0.0
    %1702 = vmatprep.subr.mxu0 0.0
    %1703 = vmatpush2.msra.mxu0 0.0
    %1704 = vmatprep.subr.mxu0 0.0
    %1705 = vmatpush2.msra.mxu0 0.0
    %1706 = vmatprep.subr.mxu0 0.0
    %1707 = vmatpush2.msra.mxu0 0.0
    %1708 = vmatprep.subr.mxu0 0.0
    %1709 = vmatpush2.msra.mxu0 0.0
    %1710 = vmatprep.subr.mxu0 0.0
    %1711 = vmatpush2.msra.mxu0 0.0
    %1712 = vmatprep.subr.mxu0 0.0
    %1713 = vmatpush2.msra.mxu0 0.0
    %1714 = vmatprep.subr.mxu0 0.0
    %1715 = vmatpush2.msra.mxu0 0.0
    %1716 = vmatprep.subr.mxu0 0.0
    %1717 = vmatpush2.msra.mxu0 0.0
    %1718 = vmatprep.mubr.f32.mxu0 0.0
    %1719 = vmatmul.mubr.f32.gmra.mxu0 %v1645
    %v1720 = vpop.f32.mrf.mxu0
    %v1721 = vadd.f32 0.0, %v1720
    %v1722 = vpop.f32.mrf.mxu0
    %1723 = vmatprep.mubr.f32.mxu0 0.0
    %1724 = vmatmul.mubr.f32.gmra.mxu0 %v1648
    %v1725 = vpop.f32.mrf.mxu0
    %v1726 = vadd.f32 0.0, %v1725
    %v1727 = vpop.f32.mrf.mxu0
    %1728 = vdwg.mxu0
    %v1730 = vsel %vm240, %v1636, 0
    %v1733 = vsel %vm240, %v1637, 0
    %1735 = vmatprep.subr.mxu0 0.0
    %1736 = vmatpush1.msra.mxu0 0.0
    %1737 = vmatprep.subr.mxu0 0.0
    %1738 = vmatpush1.msra.mxu0 0.0
    %1739 = vmatprep.subr.mxu0 0.0
    %1740 = vmatpush1.msra.mxu0 0.0
    %1741 = vmatprep.subr.mxu0 0.0
    %1742 = vmatpush1.msra.mxu0 0.0
    %1743 = vmatprep.subr.mxu0 0.0
    %1744 = vmatpush1.msra.mxu0 0.0
    %1745 = vmatprep.subr.mxu0 0.0
    %1746 = vmatpush1.msra.mxu0 0.0
    %1747 = vmatprep.subr.mxu0 0.0
    %1748 = vmatpush1.msra.mxu0 0.0
    %1749 = vmatprep.subr.mxu0 0.0
    %1750 = vmatpush1.msra.mxu0 0.0
    %1751 = vmatprep.subr.mxu0 0.0
    %1752 = vmatpush1.msra.mxu0 0.0
    %1753 = vmatprep.subr.mxu0 0.0
    %1754 = vmatpush1.msra.mxu0 0.0
    %1755 = vmatprep.subr.mxu0 0.0
    %1756 = vmatpush1.msra.mxu0 0.0
    %1757 = vmatprep.subr.mxu0 0.0
    %1758 = vmatpush1.msra.mxu0 0.0
    %1759 = vmatprep.subr.mxu0 0.0
    %1760 = vmatpush1.msra.mxu0 %v1641
    %1761 = vmatprep.subr.mxu0 0.0
    %1762 = vmatpush1.msra.mxu0 %v1640
    %1763 = vmatprep.subr.mxu0 0.0
    %1764 = vmatpush1.msra.mxu0 %v1639
    %1765 = vmatprep.subr.mxu0 0.0
    %1766 = vmatpush1.msra.mxu0 %v1638
    %1767 = vmatprep.subr.mxu0 0.0
    %1768 = vmatpush2.msra.mxu0 0.0
    %1769 = vmatprep.subr.mxu0 0.0
    %1770 = vmatpush2.msra.mxu0 0.0
    %1771 = vmatprep.subr.mxu0 0.0
    %1772 = vmatpush2.msra.mxu0 0.0
    %1773 = vmatprep.subr.mxu0 0.0
    %1774 = vmatpush2.msra.mxu0 0.0
    %1775 = vmatprep.subr.mxu0 0.0
    %1776 = vmatpush2.msra.mxu0 0.0
    %1777 = vmatprep.subr.mxu0 0.0
    %1778 = vmatpush2.msra.mxu0 0.0
    %1779 = vmatprep.subr.mxu0 0.0
    %1780 = vmatpush2.msra.mxu0 0.0
    %1781 = vmatprep.subr.mxu0 0.0
    %1782 = vmatpush2.msra.mxu0 0.0
    %1783 = vmatprep.subr.mxu0 0.0
    %1784 = vmatpush2.msra.mxu0 0.0
    %1785 = vmatprep.subr.mxu0 0.0
    %1786 = vmatpush2.msra.mxu0 0.0
    %1787 = vmatprep.subr.mxu0 0.0
    %1788 = vmatpush2.msra.mxu0 0.0
    %1789 = vmatprep.subr.mxu0 0.0
    %1790 = vmatpush2.msra.mxu0 0.0
    %1791 = vmatprep.subr.mxu0 0.0
    %1792 = vmatpush2.msra.mxu0 0.0
    %1793 = vmatprep.subr.mxu0 0.0
    %1794 = vmatpush2.msra.mxu0 0.0
    %1795 = vmatprep.subr.mxu0 0.0
    %1796 = vmatpush2.msra.mxu0 0.0
    %1797 = vmatprep.subr.mxu0 0.0
    %1798 = vmatpush2.msra.mxu0 0.0
    %1799 = vmatprep.mubr.f32.mxu0 0.0
    %1800 = vmatmul.mubr.f32.gmra.mxu0 %v1730
    %v1801 = vpop.f32.mrf.mxu0
    %v1802 = vadd.f32 %v1721, %v1801
    %v1803 = vpop.f32.mrf.mxu0
    %1804 = vmatprep.mubr.f32.mxu0 0.0
    %1805 = vmatmul.mubr.f32.gmra.mxu0 %v1733
    %v1806 = vpop.f32.mrf.mxu0
    %v1807 = vadd.f32 %v1726, %v1806
    %v1808 = vpop.f32.mrf.mxu0
    %1809 = vdwg.mxu0
    %v1810 = vld [vmem:[%s13] sm:$0x1]
    %v1812 = vlaneseq
    %v1813 = vshrl.u32 %v1812, 7
    %v1814 = vsub.s32 0, %v1813
    %v1815 = vrot.slane %v1810, %v1814
    %v1817 = vadd.f32 %v1802, %v1815
    %v1818 = vadd.f32 %v1807, %v1815
    %1819 = vst.msk [vmem:[#allocation14] sm:$0xff] %vm141, %v1817
    %1820 = vst.msk [vmem:[#allocation14 + $0x8] sm:$0xff] %vm141, %v1818
    // Predicated region
    $region82: #{tpu_custom_call.1} parent=1 // pred_check
      _
    $region83: #{tpu_custom_call.1} parent=1 // pred_check_branch
      %1822 = sbr.rel (0) target = $region85
    $region84: #{tpu_custom_call.1} parent=1 // pred_region
      %s1824 = ssub.s32 256, 256
      %1825 = vsyncadd [#allocation5], %s1824
      %s1826 = sshll.u32 [#allocation14], 4
      %s1827 = int_to_ptr.vmem [resolvable:$true] %s1826
      %1832 = dma.vmem_to_hbm [thread:$0]  %s1827, 256, %s14, [#allocation5], 128, 128, 8
    $region85: #{tpu_custom_call.1} parent=1 // pred_fallthru
      _
    // Predicated region
    $region86: #{tpu_custom_call.1} parent=1 // pred_check
      _
    $region87: #{tpu_custom_call.1} parent=1 // pred_check_branch
      %1834 = sbr.rel (0) target = $region89
    $region88: #{tpu_custom_call.1} parent=1 // pred_region
      %s1836 = ssub.s32 32, 32
      %1837 = vsyncadd [#allocation16], %s1836
      %s1839 = sshll.u32 [#allocation15], 4
      %s1840 = int_to_ptr.vmem [resolvable:$true] %s1839
      %1842 = dma.vmem_to_hbm [thread:$0]  %s1840, 32, %s15, [#allocation16]
    $region89: #{tpu_custom_call.1} parent=1 // pred_fallthru
      _
    // Predicated region
    $region90: #{tpu_custom_call.1} parent=1 // pred_check
      _
    $region91: #{tpu_custom_call.1} parent=1 // pred_check_branch
      %1844 = sbr.rel (0) target = $region93
    $region92: #{tpu_custom_call.1} parent=1 // pred_region
      %s1846 = ssub.s32 32, 32
      %1847 = vsyncadd [#allocation16], %s1846
      %s1849 = sshll.u32 [#allocation17], 4
      %s1850 = int_to_ptr.vmem [resolvable:$true] %s1849
      %1852 = dma.vmem_to_hbm [thread:$0]  %s1850, 32, %s16, [#allocation16]
    $region93: #{tpu_custom_call.1} parent=1 // pred_fallthru
      _
    // Predicated region
    $region94: #{tpu_custom_call.1} parent=1 // pred_check
      _
    $region95: #{tpu_custom_call.1} parent=1 // pred_check_branch
      %1854 = sbr.rel (0) target = $region97
    $region96: #{tpu_custom_call.1} parent=1 // pred_region
      %1855 = dma.done [#allocation5], 256
    $region97: #{tpu_custom_call.1} parent=1 // pred_fallthru
      _
    // Predicated region
    $region98: #{tpu_custom_call.1} parent=1 // pred_check
      _
    $region99: #{tpu_custom_call.1} parent=1 // pred_check_branch
      %1857 = sbr.rel (0) target = $region101
    $region100: #{tpu_custom_call.1} parent=1 // pred_region
      %1858 = dma.done [#allocation16], 32
    $region101: #{tpu_custom_call.1} parent=1 // pred_fallthru
      _
    // Predicated region
    $region102: #{tpu_custom_call.1} parent=1 // pred_check
      _
    $region103: #{tpu_custom_call.1} parent=1 // pred_check_branch
      %1860 = sbr.rel (0) target = $region105
    $region104: #{tpu_custom_call.1} parent=1 // pred_region
      %1861 = dma.done [#allocation16], 32
    $region105: #{tpu_custom_call.1} parent=1 // pred_fallthru
      _
    %1862 = vsyncpa [#allocation4], 1
    %1863 = vsyncpa [#allocation7], 1
    %1864 = vsyncpa [#allocation10], 1
    %1865 = vsyncpa [#allocation13], 1
    %1866 = vsyncpa [#allocation5], 1
    %1867 = vsyncpa [#allocation16], 1

</llo_original>
